<compile_context>
chip_gen: v6e
topology: v6e:2x2x1
jax: 0.10.0
libtpu: 0.0.40
codegen_flags: <defaults>
</compile_context>

<pallas_src>
import functools

import jax
import jax.numpy as jnp
from jax.experimental import pallas as pl
from jax.experimental.pallas import tpu as pltpu


def _round_up(n, m):
    return ((n + m - 1) // m) * m


def _largest_divisor_leq(n, cap):
    for d in range(min(n, cap), 0, -1):
        if n % d == 0:
            return d
    return 1


def _conv1d_im2col_kernel(x_ref, w_ref, o_ref, *, K, L_out_pad, ck_pad, mxu_dtype):
    # x_ref : (TB, C_in, L_pad)      input batch block (L zero-padded on host)
    # w_ref : (C_out, CK_pad)        cols [k*C_in + ci] = w[o, ci, k]; col K*C_in = bias; rest 0
    # o_ref : (TB, C_out, L_out_pad) lane-dense output block
    TB, C_in, _ = x_ref.shape
    ck = K * C_in

    x = x_ref[...].astype(mxu_dtype)      # cast once; windows stay bf16 (small vreg footprint)
    w = w_ref[...]                        # (C_out, CK_pad), resident across the whole grid

    # im2col: K lane-shifted windows (XLU work that co-issues with MXU pushes),
    # plus a ones row (folds the bias into the matmul) and zero pad rows so the
    # contraction depth is a clean multiple of 128 (single-pass on v5e too).
    pieces = [x[:, :, k:k + L_out_pad] for k in range(K)]          # each (TB, C_in, L_out_pad)
    pieces.append(jnp.ones((TB, 1, L_out_pad), mxu_dtype))         # bias row
    if ck_pad > ck + 1:
        pieces.append(jnp.zeros((TB, ck_pad - ck - 1, L_out_pad), mxu_dtype))
    patches = jnp.concatenate(pieces, axis=1)                      # (TB, CK_pad, L_out_pad)

    # One MXU contraction per batch element, f32 accumulation.
    for b_idx in range(TB):
        o_ref[b_idx] = jnp.dot(
            w, patches[b_idx], preferred_element_type=jnp.float32
        ).astype(o_ref.dtype)


def conv1d_layer(x, w, b, *, block_b=None, mxu_dtype=jnp.bfloat16):
    """x: (B, C_in, L), w: (C_out, C_in, K), b: (C_out,) -> (B, C_out, L-K+1)."""
    B, C_in, L = x.shape
    C_out, C_in_w, K = w.shape
    assert C_in_w == C_in, "weight / input channel mismatch"
    L_out = L - K + 1
    assert L_out >= 1, "kernel longer than input"

    # Lane-dense output: pad L_out up to a multiple of 128 (unmasked vst),
    # slice back on the host.  Input padded with zeros accordingly.
    L_out_pad = _round_up(L_out, 128)
    L_pad = L_out_pad + K - 1
    if L_pad > L:
        x = jnp.pad(x, ((0, 0), (0, 0), (0, L_pad - L)))

    # Weight matrix: K*C_in conv columns (k-major, matching the in-kernel window
    # concat order), one bias column, zero-padded contraction depth of 128*n.
    ck = K * C_in
    ck_pad = _round_up(ck + 1, 128)
    w2 = jnp.zeros((C_out, ck_pad), jnp.float32)
    w2 = w2.at[:, :ck].set(jnp.transpose(w, (0, 2, 1)).reshape(C_out, ck).astype(jnp.float32))
    w2 = w2.at[:, ck].set(b.astype(jnp.float32))
    w2 = w2.astype(mxu_dtype)

    if block_b is None:
        # Largest divisor of B up to 8: B=8 -> one grid step; large B still gets
        # several steps per core so BlockSpec double-buffering has work to hide.
        block_b = _largest_divisor_leq(B, 8)
    assert B % block_b == 0, "block_b must divide the batch"

    kernel = functools.partial(
        _conv1d_im2col_kernel,
        K=K, L_out_pad=L_out_pad, ck_pad=ck_pad, mxu_dtype=mxu_dtype)

    out_pad = pl.pallas_call(
        kernel,
        out_shape=jax.ShapeDtypeStruct((B, C_out, L_out_pad), x.dtype),
        grid_spec=pltpu.PrefetchScalarGridSpec(
            num_scalar_prefetch=0,
            grid=(B // block_b,),
            in_specs=[
                pl.BlockSpec((block_b, C_in, L_pad), lambda i: (i, 0, 0)),  # x batch block
                pl.BlockSpec((C_out, ck_pad), lambda i: (0, 0)),            # weight+bias (resident)
            ],
            out_specs=pl.BlockSpec((block_b, C_out, L_out_pad), lambda i: (i, 0, 0)),
        ),
        compiler_params=pltpu.CompilerParams(
            dimension_semantics=("parallel",),   # shard batch blocks across TCs (v7x)
        ),
    )(x, w2)

    return out_pad[..., :L_out]


def conv1d_ref(x, w, b):
    """Pure-JAX f32 reference matching nn.Conv1d (stride 1, no padding)."""
    out = jax.lax.conv_general_dilated(
        x, w, window_strides=(1,), padding="VALID",
        dimension_numbers=("NCH", "OIH", "NCH"))
    return out + b[None, :, None]


if __name__ == "__main__":
    key = jax.random.PRNGKey(0)

    # Small shapes consistent with the module: kernel_size = 30 (per the model
    # file name); L chosen so L_out = 128 (lane-dense output without padding).
    B, C_in, L = 8, 4, 157
    C_out, K = 8, 30

    kx, kw, kb = jax.random.split(key, 3)
    x = jax.random.normal(kx, (B, C_in, L), dtype=jnp.float32)

    # PyTorch-style uniform init bounds: U(-1/sqrt(C_in*K), 1/sqrt(C_in*K)).
    bound = 1.0 / (C_in * K) ** 0.5
    w = jax.random.uniform(kw, (C_out, C_in, K), minval=-bound, maxval=bound,
                           dtype=jnp.float32)
    b = jax.random.uniform(kb, (C_out,), minval=-bound, maxval=bound,
                           dtype=jnp.float32)

    out = jax.block_until_ready(conv1d_layer(x, w, b))   # block_b=8 -> grid=(1,)

    ref = conv1d_ref(x, w, b)
    assert out.shape == ref.shape == (B, C_out, L - K + 1)
    # bf16 MXU operands with f32 accumulation: compare against the f32 reference
    # with a tolerance that covers bf16 operand rounding (~0.5% relative here).
    max_err = jnp.max(jnp.abs(out - ref))
    assert jnp.allclose(out, ref, atol=3e-2, rtol=3e-2), f"mismatch vs reference, max err {max_err}"

    print("KERNEL_OK")
</pallas_src>

<mosaic_0001>
module attributes {stable_mosaic.version = 11 : i64} {
  func.func @_conv1d_im2col_kernel(%arg0: i32, %arg1: memref<8x4x157xf32, #tpu.memory_space<vmem>>, %arg2: memref<8x128xbf16, #tpu.memory_space<vmem>>, %arg3: memref<8x8x128xf32, #tpu.memory_space<vmem>>) attributes {dimension_semantics = [#tpu.dimension_semantics<parallel>], iteration_bounds = array<i64: 1>, scalar_prefetch = 0 : i64, scratch_operands = 0 : i64, tpu.core_type = #tpu.core_type<tc>, window_params = [{transform_indices = @transform_0, window_bounds = array<i64: 8, 4, 157>}, {pipeline_mode = #tpu.pipeline_mode<synchronous>, transform_indices = @transform_1, window_bounds = array<i64: 8, 128>}, {transform_indices = @transform_2, window_bounds = array<i64: 8, 8, 128>}]} {
    %c0 = arith.constant 0 : index
    %c0_0 = arith.constant 0 : index
    %c0_1 = arith.constant 0 : index
    %0 = vector.load %arg1[%c0, %c0_0, %c0_1] : memref<8x4x157xf32, #tpu.memory_space<vmem>>, vector<8x4x157xf32>
    %1 = arith.truncf %0 : vector<8x4x157xf32> to vector<8x4x157xbf16>
    %c0_2 = arith.constant 0 : index
    %c0_3 = arith.constant 0 : index
    %2 = vector.load %arg2[%c0_2, %c0_3] : memref<8x128xbf16, #tpu.memory_space<vmem>>, vector<8x128xbf16>
    %3 = vector.extract_strided_slice %1 {offsets = [0, 0, 0], sizes = [8, 4, 128], strides = [1, 1, 1]} : vector<8x4x157xbf16> to vector<8x4x128xbf16>
    %4 = vector.extract_strided_slice %1 {offsets = [0, 0, 1], sizes = [8, 4, 128], strides = [1, 1, 1]} : vector<8x4x157xbf16> to vector<8x4x128xbf16>
    %5 = vector.extract_strided_slice %1 {offsets = [0, 0, 2], sizes = [8, 4, 128], strides = [1, 1, 1]} : vector<8x4x157xbf16> to vector<8x4x128xbf16>
    %6 = vector.extract_strided_slice %1 {offsets = [0, 0, 3], sizes = [8, 4, 128], strides = [1, 1, 1]} : vector<8x4x157xbf16> to vector<8x4x128xbf16>
    %7 = vector.extract_strided_slice %1 {offsets = [0, 0, 4], sizes = [8, 4, 128], strides = [1, 1, 1]} : vector<8x4x157xbf16> to vector<8x4x128xbf16>
    %8 = vector.extract_strided_slice %1 {offsets = [0, 0, 5], sizes = [8, 4, 128], strides = [1, 1, 1]} : vector<8x4x157xbf16> to vector<8x4x128xbf16>
    %9 = vector.extract_strided_slice %1 {offsets = [0, 0, 6], sizes = [8, 4, 128], strides = [1, 1, 1]} : vector<8x4x157xbf16> to vector<8x4x128xbf16>
    %10 = vector.extract_strided_slice %1 {offsets = [0, 0, 7], sizes = [8, 4, 128], strides = [1, 1, 1]} : vector<8x4x157xbf16> to vector<8x4x128xbf16>
    %11 = vector.extract_strided_slice %1 {offsets = [0, 0, 8], sizes = [8, 4, 128], strides = [1, 1, 1]} : vector<8x4x157xbf16> to vector<8x4x128xbf16>
    %12 = vector.extract_strided_slice %1 {offsets = [0, 0, 9], sizes = [8, 4, 128], strides = [1, 1, 1]} : vector<8x4x157xbf16> to vector<8x4x128xbf16>
    %13 = vector.extract_strided_slice %1 {offsets = [0, 0, 10], sizes = [8, 4, 128], strides = [1, 1, 1]} : vector<8x4x157xbf16> to vector<8x4x128xbf16>
    %14 = vector.extract_strided_slice %1 {offsets = [0, 0, 11], sizes = [8, 4, 128], strides = [1, 1, 1]} : vector<8x4x157xbf16> to vector<8x4x128xbf16>
    %15 = vector.extract_strided_slice %1 {offsets = [0, 0, 12], sizes = [8, 4, 128], strides = [1, 1, 1]} : vector<8x4x157xbf16> to vector<8x4x128xbf16>
    %16 = vector.extract_strided_slice %1 {offsets = [0, 0, 13], sizes = [8, 4, 128], strides = [1, 1, 1]} : vector<8x4x157xbf16> to vector<8x4x128xbf16>
    %17 = vector.extract_strided_slice %1 {offsets = [0, 0, 14], sizes = [8, 4, 128], strides = [1, 1, 1]} : vector<8x4x157xbf16> to vector<8x4x128xbf16>
    %18 = vector.extract_strided_slice %1 {offsets = [0, 0, 15], sizes = [8, 4, 128], strides = [1, 1, 1]} : vector<8x4x157xbf16> to vector<8x4x128xbf16>
    %19 = vector.extract_strided_slice %1 {offsets = [0, 0, 16], sizes = [8, 4, 128], strides = [1, 1, 1]} : vector<8x4x157xbf16> to vector<8x4x128xbf16>
    %20 = vector.extract_strided_slice %1 {offsets = [0, 0, 17], sizes = [8, 4, 128], strides = [1, 1, 1]} : vector<8x4x157xbf16> to vector<8x4x128xbf16>
    %21 = vector.extract_strided_slice %1 {offsets = [0, 0, 18], sizes = [8, 4, 128], strides = [1, 1, 1]} : vector<8x4x157xbf16> to vector<8x4x128xbf16>
    %22 = vector.extract_strided_slice %1 {offsets = [0, 0, 19], sizes = [8, 4, 128], strides = [1, 1, 1]} : vector<8x4x157xbf16> to vector<8x4x128xbf16>
    %23 = vector.extract_strided_slice %1 {offsets = [0, 0, 20], sizes = [8, 4, 128], strides = [1, 1, 1]} : vector<8x4x157xbf16> to vector<8x4x128xbf16>
    %24 = vector.extract_strided_slice %1 {offsets = [0, 0, 21], sizes = [8, 4, 128], strides = [1, 1, 1]} : vector<8x4x157xbf16> to vector<8x4x128xbf16>
    %25 = vector.extract_strided_slice %1 {offsets = [0, 0, 22], sizes = [8, 4, 128], strides = [1, 1, 1]} : vector<8x4x157xbf16> to vector<8x4x128xbf16>
    %26 = vector.extract_strided_slice %1 {offsets = [0, 0, 23], sizes = [8, 4, 128], strides = [1, 1, 1]} : vector<8x4x157xbf16> to vector<8x4x128xbf16>
    %27 = vector.extract_strided_slice %1 {offsets = [0, 0, 24], sizes = [8, 4, 128], strides = [1, 1, 1]} : vector<8x4x157xbf16> to vector<8x4x128xbf16>
    %28 = vector.extract_strided_slice %1 {offsets = [0, 0, 25], sizes = [8, 4, 128], strides = [1, 1, 1]} : vector<8x4x157xbf16> to vector<8x4x128xbf16>
    %29 = vector.extract_strided_slice %1 {offsets = [0, 0, 26], sizes = [8, 4, 128], strides = [1, 1, 1]} : vector<8x4x157xbf16> to vector<8x4x128xbf16>
    %30 = vector.extract_strided_slice %1 {offsets = [0, 0, 27], sizes = [8, 4, 128], strides = [1, 1, 1]} : vector<8x4x157xbf16> to vector<8x4x128xbf16>
    %31 = vector.extract_strided_slice %1 {offsets = [0, 0, 28], sizes = [8, 4, 128], strides = [1, 1, 1]} : vector<8x4x157xbf16> to vector<8x4x128xbf16>
    %32 = vector.extract_strided_slice %1 {offsets = [0, 0, 29], sizes = [8, 4, 128], strides = [1, 1, 1]} : vector<8x4x157xbf16> to vector<8x4x128xbf16>
    %cst = arith.constant 1.000000e+00 : bf16
    %33 = vector.broadcast %cst : bf16 to vector<8x1x128xbf16>
    %cst_4 = arith.constant 0.000000e+00 : bf16
    %34 = vector.broadcast %cst_4 : bf16 to vector<8x7x128xbf16>
    %35 = tpu.concatenate %3, %4, %5, %6, %7, %8, %9, %10, %11, %12, %13, %14, %15, %16, %17, %18 in 1 : vector<8x4x128xbf16>, vector<8x4x128xbf16>, vector<8x4x128xbf16>, vector<8x4x128xbf16>, vector<8x4x128xbf16>, vector<8x4x128xbf16>, vector<8x4x128xbf16>, vector<8x4x128xbf16>, vector<8x4x128xbf16>, vector<8x4x128xbf16>, vector<8x4x128xbf16>, vector<8x4x128xbf16>, vector<8x4x128xbf16>, vector<8x4x128xbf16>, vector<8x4x128xbf16>, vector<8x4x128xbf16> -> vector<8x64x128xbf16>
    %36 = tpu.concatenate %19, %20, %21, %22, %23, %24, %25, %26, %27, %28, %29, %30, %31, %32, %33, %34 in 1 : vector<8x4x128xbf16>, vector<8x4x128xbf16>, vector<8x4x128xbf16>, vector<8x4x128xbf16>, vector<8x4x128xbf16>, vector<8x4x128xbf16>, vector<8x4x128xbf16>, vector<8x4x128xbf16>, vector<8x4x128xbf16>, vector<8x4x128xbf16>, vector<8x4x128xbf16>, vector<8x4x128xbf16>, vector<8x4x128xbf16>, vector<8x4x128xbf16>, vector<8x1x128xbf16>, vector<8x7x128xbf16> -> vector<8x64x128xbf16>
    %37 = tpu.concatenate %35, %36 in 1 : vector<8x64x128xbf16>, vector<8x64x128xbf16> -> vector<8x128x128xbf16>
    %38 = vector.extract_strided_slice %37 {offsets = [0, 0, 0], sizes = [1, 128, 128], strides = [1, 1, 1]} : vector<8x128x128xbf16> to vector<1x128x128xbf16>
    %39 = vector.shape_cast %38 : vector<1x128x128xbf16> to vector<128x128xbf16>
    %cst_5 = arith.constant dense<0.000000e+00> : vector<8x128xf32>
    %40 = tpu.matmul %2, %39, %cst_5 {dimension_numbers = #tpu.dot_dimension_numbers<[1], [0], [0], [1], [0, 0, 1, 1], [], []>} : vector<8x128xbf16>, vector<128x128xbf16>, vector<8x128xf32> -> vector<8x128xf32>
    %c0_6 = arith.constant 0 : index
    %c0_7 = arith.constant 0 : index
    %c0_8 = arith.constant 0 : index
    %41 = vector.load %arg3[%c0_6, %c0_7, %c0_8] : memref<8x8x128xf32, #tpu.memory_space<vmem>>, vector<1x8x128xf32>
    %42 = vector.shape_cast %41 : vector<1x8x128xf32> to vector<8x128xf32>
    %43 = vector.shape_cast %40 : vector<8x128xf32> to vector<1x8x128xf32>
    tpu.vector_store %arg3[%c0_6, %c0_7, %c0_8], %43 {strides = array<i32>} : memref<8x8x128xf32, #tpu.memory_space<vmem>>, vector<1x8x128xf32>,
    %44 = vector.extract_strided_slice %37 {offsets = [1, 0, 0], sizes = [1, 128, 128], strides = [1, 1, 1]} : vector<8x128x128xbf16> to vector<1x128x128xbf16>
    %45 = vector.shape_cast %44 : vector<1x128x128xbf16> to vector<128x128xbf16>
    %cst_9 = arith.constant dense<0.000000e+00> : vector<8x128xf32>
    %46 = tpu.matmul %2, %45, %cst_9 {dimension_numbers = #tpu.dot_dimension_numbers<[1], [0], [0], [1], [0, 0, 1, 1], [], []>} : vector<8x128xbf16>, vector<128x128xbf16>, vector<8x128xf32> -> vector<8x128xf32>
    %c1 = arith.constant 1 : index
    %c0_10 = arith.constant 0 : index
    %c0_11 = arith.constant 0 : index
    %47 = vector.load %arg3[%c1, %c0_10, %c0_11] : memref<8x8x128xf32, #tpu.memory_space<vmem>>, vector<1x8x128xf32>
    %48 = vector.shape_cast %47 : vector<1x8x128xf32> to vector<8x128xf32>
    %49 = vector.shape_cast %46 : vector<8x128xf32> to vector<1x8x128xf32>
    tpu.vector_store %arg3[%c1, %c0_10, %c0_11], %49 {strides = array<i32>} : memref<8x8x128xf32, #tpu.memory_space<vmem>>, vector<1x8x128xf32>,
    %50 = vector.extract_strided_slice %37 {offsets = [2, 0, 0], sizes = [1, 128, 128], strides = [1, 1, 1]} : vector<8x128x128xbf16> to vector<1x128x128xbf16>
    %51 = vector.shape_cast %50 : vector<1x128x128xbf16> to vector<128x128xbf16>
    %cst_12 = arith.constant dense<0.000000e+00> : vector<8x128xf32>
    %52 = tpu.matmul %2, %51, %cst_12 {dimension_numbers = #tpu.dot_dimension_numbers<[1], [0], [0], [1], [0, 0, 1, 1], [], []>} : vector<8x128xbf16>, vector<128x128xbf16>, vector<8x128xf32> -> vector<8x128xf32>
    %c2 = arith.constant 2 : index
    %c0_13 = arith.constant 0 : index
    %c0_14 = arith.constant 0 : index
    %53 = vector.load %arg3[%c2, %c0_13, %c0_14] : memref<8x8x128xf32, #tpu.memory_space<vmem>>, vector<1x8x128xf32>
    %54 = vector.shape_cast %53 : vector<1x8x128xf32> to vector<8x128xf32>
    %55 = vector.shape_cast %52 : vector<8x128xf32> to vector<1x8x128xf32>
    tpu.vector_store %arg3[%c2, %c0_13, %c0_14], %55 {strides = array<i32>} : memref<8x8x128xf32, #tpu.memory_space<vmem>>, vector<1x8x128xf32>,
    %56 = vector.extract_strided_slice %37 {offsets = [3, 0, 0], sizes = [1, 128, 128], strides = [1, 1, 1]} : vector<8x128x128xbf16> to vector<1x128x128xbf16>
    %57 = vector.shape_cast %56 : vector<1x128x128xbf16> to vector<128x128xbf16>
    %cst_15 = arith.constant dense<0.000000e+00> : vector<8x128xf32>
    %58 = tpu.matmul %2, %57, %cst_15 {dimension_numbers = #tpu.dot_dimension_numbers<[1], [0], [0], [1], [0, 0, 1, 1], [], []>} : vector<8x128xbf16>, vector<128x128xbf16>, vector<8x128xf32> -> vector<8x128xf32>
    %c3 = arith.constant 3 : index
    %c0_16 = arith.constant 0 : index
    %c0_17 = arith.constant 0 : index
    %59 = vector.load %arg3[%c3, %c0_16, %c0_17] : memref<8x8x128xf32, #tpu.memory_space<vmem>>, vector<1x8x128xf32>
    %60 = vector.shape_cast %59 : vector<1x8x128xf32> to vector<8x128xf32>
    %61 = vector.shape_cast %58 : vector<8x128xf32> to vector<1x8x128xf32>
    tpu.vector_store %arg3[%c3, %c0_16, %c0_17], %61 {strides = array<i32>} : memref<8x8x128xf32, #tpu.memory_space<vmem>>, vector<1x8x128xf32>,
    %62 = vector.extract_strided_slice %37 {offsets = [4, 0, 0], sizes = [1, 128, 128], strides = [1, 1, 1]} : vector<8x128x128xbf16> to vector<1x128x128xbf16>
    %63 = vector.shape_cast %62 : vector<1x128x128xbf16> to vector<128x128xbf16>
    %cst_18 = arith.constant dense<0.000000e+00> : vector<8x128xf32>
    %64 = tpu.matmul %2, %63, %cst_18 {dimension_numbers = #tpu.dot_dimension_numbers<[1], [0], [0], [1], [0, 0, 1, 1], [], []>} : vector<8x128xbf16>, vector<128x128xbf16>, vector<8x128xf32> -> vector<8x128xf32>
    %c4 = arith.constant 4 : index
    %c0_19 = arith.constant 0 : index
    %c0_20 = arith.constant 0 : index
    %65 = vector.load %arg3[%c4, %c0_19, %c0_20] : memref<8x8x128xf32, #tpu.memory_space<vmem>>, vector<1x8x128xf32>
    %66 = vector.shape_cast %65 : vector<1x8x128xf32> to vector<8x128xf32>
    %67 = vector.shape_cast %64 : vector<8x128xf32> to vector<1x8x128xf32>
    tpu.vector_store %arg3[%c4, %c0_19, %c0_20], %67 {strides = array<i32>} : memref<8x8x128xf32, #tpu.memory_space<vmem>>, vector<1x8x128xf32>,
    %68 = vector.extract_strided_slice %37 {offsets = [5, 0, 0], sizes = [1, 128, 128], strides = [1, 1, 1]} : vector<8x128x128xbf16> to vector<1x128x128xbf16>
    %69 = vector.shape_cast %68 : vector<1x128x128xbf16> to vector<128x128xbf16>
    %cst_21 = arith.constant dense<0.000000e+00> : vector<8x128xf32>
    %70 = tpu.matmul %2, %69, %cst_21 {dimension_numbers = #tpu.dot_dimension_numbers<[1], [0], [0], [1], [0, 0, 1, 1], [], []>} : vector<8x128xbf16>, vector<128x128xbf16>, vector<8x128xf32> -> vector<8x128xf32>
    %c5 = arith.constant 5 : index
    %c0_22 = arith.constant 0 : index
    %c0_23 = arith.constant 0 : index
    %71 = vector.load %arg3[%c5, %c0_22, %c0_23] : memref<8x8x128xf32, #tpu.memory_space<vmem>>, vector<1x8x128xf32>
    %72 = vector.shape_cast %71 : vector<1x8x128xf32> to vector<8x128xf32>
    %73 = vector.shape_cast %70 : vector<8x128xf32> to vector<1x8x128xf32>
    tpu.vector_store %arg3[%c5, %c0_22, %c0_23], %73 {strides = array<i32>} : memref<8x8x128xf32, #tpu.memory_space<vmem>>, vector<1x8x128xf32>,
    %74 = vector.extract_strided_slice %37 {offsets = [6, 0, 0], sizes = [1, 128, 128], strides = [1, 1, 1]} : vector<8x128x128xbf16> to vector<1x128x128xbf16>
    %75 = vector.shape_cast %74 : vector<1x128x128xbf16> to vector<128x128xbf16>
    %cst_24 = arith.constant dense<0.000000e+00> : vector<8x128xf32>
    %76 = tpu.matmul %2, %75, %cst_24 {dimension_numbers = #tpu.dot_dimension_numbers<[1], [0], [0], [1], [0, 0, 1, 1], [], []>} : vector<8x128xbf16>, vector<128x128xbf16>, vector<8x128xf32> -> vector<8x128xf32>
    %c6 = arith.constant 6 : index
    %c0_25 = arith.constant 0 : index
    %c0_26 = arith.constant 0 : index
    %77 = vector.load %arg3[%c6, %c0_25, %c0_26] : memref<8x8x128xf32, #tpu.memory_space<vmem>>, vector<1x8x128xf32>
    %78 = vector.shape_cast %77 : vector<1x8x128xf32> to vector<8x128xf32>
    %79 = vector.shape_cast %76 : vector<8x128xf32> to vector<1x8x128xf32>
    tpu.vector_store %arg3[%c6, %c0_25, %c0_26], %79 {strides = array<i32>} : memref<8x8x128xf32, #tpu.memory_space<vmem>>, vector<1x8x128xf32>,
    %80 = vector.extract_strided_slice %37 {offsets = [7, 0, 0], sizes = [1, 128, 128], strides = [1, 1, 1]} : vector<8x128x128xbf16> to vector<1x128x128xbf16>
    %81 = vector.shape_cast %80 : vector<1x128x128xbf16> to vector<128x128xbf16>
    %cst_27 = arith.constant dense<0.000000e+00> : vector<8x128xf32>
    %82 = tpu.matmul %2, %81, %cst_27 {dimension_numbers = #tpu.dot_dimension_numbers<[1], [0], [0], [1], [0, 0, 1, 1], [], []>} : vector<8x128xbf16>, vector<128x128xbf16>, vector<8x128xf32> -> vector<8x128xf32>
    %c7 = arith.constant 7 : index
    %c0_28 = arith.constant 0 : index
    %c0_29 = arith.constant 0 : index
    %83 = vector.load %arg3[%c7, %c0_28, %c0_29] : memref<8x8x128xf32, #tpu.memory_space<vmem>>, vector<1x8x128xf32>
    %84 = vector.shape_cast %83 : vector<1x8x128xf32> to vector<8x128xf32>
    %85 = vector.shape_cast %82 : vector<8x128xf32> to vector<1x8x128xf32>
    tpu.vector_store %arg3[%c7, %c0_28, %c0_29], %85 {strides = array<i32>} : memref<8x8x128xf32, #tpu.memory_space<vmem>>, vector<1x8x128xf32>,
    return
  }
  func.func @transform_0(%arg0: i32) -> (i32, i32, i32) {
    %c0_i32 = arith.constant 0 : i32
    %c0_i32_0 = arith.constant 0 : i32
    %c0_i32_1 = arith.constant 0 : i32
    return %arg0, %c0_i32, %c0_i32_0 : i32, i32, i32
  }
  func.func @transform_1(%arg0: i32) -> (i32, i32) {
    %c0_i32 = arith.constant 0 : i32
    %c0_i32_0 = arith.constant 0 : i32
    %c0_i32_1 = arith.constant 0 : i32
    return %c0_i32, %c0_i32_0 : i32, i32
  }
  func.func @transform_2(%arg0: i32) -> (i32, i32, i32) {
    %c0_i32 = arith.constant 0 : i32
    %c0_i32_0 = arith.constant 0 : i32
    %c0_i32_1 = arith.constant 0 : i32
    return %arg0, %c0_i32, %c0_i32_0 : i32, i32, i32
  }
}

</mosaic_0001>

<llo_original>
// kernel: tpu_custom_call.1
$region0: #{tpu_custom_call.1}
  #allocation0 [shape = 'u32[]', space=smem, size = 0x4, offset = 0x4, fixed_abs, tag = 'smem constant byte address 0x4 - core index']
  #allocation1 [shape = 'u32[144,128]{1,0:T(1,128)}', space=vmem, size = 0x12000, scoped, tag = 'internal scratch']
  %s0 = inlined_call_operand.hbm [shape: f32[8,4,157], index: 0, kind: input, shape index: {}]
  %s1 = inlined_call_operand.hbm [shape: bf16[8,128], index: 1, kind: input, shape index: {}]
  %s2 = inlined_call_operand.hbm [shape: f32[8,8,128], index: 2, kind: output, shape index: {}]
  %s3 = sld [smem:[#allocation0]]
  $region26: #{tpu_custom_call.1} parent=0
    _
  %s5 = ssub.s32 1, %s3
  %s6 = scalar_select 0, %s5, %s3
  $region1: #{tpu_custom_call.1} parent=0
    #allocation2 [shape = 'u8[32768]{0}', space=vmem, size = 0x8000, scoped, tag = 'input window, operand 0, single buffered']
    #allocation3 [shape = 's32[1]{0}', space=sflag, size = 0x4, scoped, tag = 'scoped memory for tpu_custom_call.1']
    #allocation4 [shape = 's32[1]{0}', space=sflag, size = 0x4, scoped, tag = 'scoped memory for tpu_custom_call.1']
    #allocation5 [shape = 'u8[2048]{0}', space=vmem, size = 0x800, scoped, tag = 'input window, operand 1, single buffered']
    #allocation6 [shape = 's32[1]{0}', space=sflag, size = 0x4, scoped, tag = 'scoped memory for tpu_custom_call.1']
    #allocation7 [shape = 'u8[32768]{0}', space=vmem, size = 0x8000, scoped, tag = 'output window, operand 0, single buffered']
    %7 = vsyncpa [#allocation3], 0
    %8 = vsyncpa [#allocation6], 0
    %9 = vsyncpa [#allocation4], 0
    // Predicated region
    $region2: #{tpu_custom_call.1} parent=1 // pred_check
      _
    $region3: #{tpu_custom_call.1} parent=1 // pred_check_branch
      %11 = sbr.rel (0) target = $region5
    $region4: #{tpu_custom_call.1} parent=1 // pred_region
      %s13 = ssub.s32 1024, 1024
      %14 = vsyncadd [#allocation3], %s13
      %s15 = sshll.u32 [#allocation2], 4
      %s16 = int_to_ptr.vmem [resolvable:$true] %s15
      %21 = dma.hbm_to_vmem [thread:$0]  %s0, 1024, %s16, [#allocation3], 128, 128, 8
    $region5: #{tpu_custom_call.1} parent=1 // pred_fallthru
      _
    // Predicated region
    $region6: #{tpu_custom_call.1} parent=1 // pred_check
      _
    $region7: #{tpu_custom_call.1} parent=1 // pred_check_branch
      %23 = sbr.rel (0) target = $region9
    $region8: #{tpu_custom_call.1} parent=1 // pred_region
      %s25 = ssub.s32 64, 64
      %26 = vsyncadd [#allocation6], %s25
      %s28 = sshll.u32 [#allocation5], 4
      %s29 = int_to_ptr.vmem [resolvable:$true] %s28
      %31 = dma.hbm_to_vmem [thread:$0]  %s1, 64, %s29, [#allocation6]
    $region9: #{tpu_custom_call.1} parent=1 // pred_fallthru
      _
    // Predicated region
    $region10: #{tpu_custom_call.1} parent=1 // pred_check
      _
    $region11: #{tpu_custom_call.1} parent=1 // pred_check_branch
      %33 = sbr.rel (0) target = $region13
    $region12: #{tpu_custom_call.1} parent=1 // pred_region
      %34 = dma.done [#allocation3], 1024
    $region13: #{tpu_custom_call.1} parent=1 // pred_fallthru
      _
    // Predicated region
    $region14: #{tpu_custom_call.1} parent=1 // pred_check
      _
    $region15: #{tpu_custom_call.1} parent=1 // pred_check_branch
      %36 = sbr.rel (0) target = $region17
    $region16: #{tpu_custom_call.1} parent=1 // pred_region
      %37 = dma.done [#allocation6], 64
    $region17: #{tpu_custom_call.1} parent=1 // pred_fallthru
      _
    %v40 = vld [vmem:[#allocation2] sm:$0xff]
    %v41 = vld [vmem:[#allocation2 + $0x8] sm:$0xff]
    %v42 = vld [vmem:[#allocation2 + $0x10] sm:$0xff]
    %v43 = vld [vmem:[#allocation2 + $0x18] sm:$0xff]
    %v44 = vld [vmem:[#allocation2 + $0x20] sm:$0xff]
    %v45 = vld [vmem:[#allocation2 + $0x28] sm:$0xff]
    %v46 = vld [vmem:[#allocation2 + $0x30] sm:$0xff]
    %v47 = vld [vmem:[#allocation2 + $0x38] sm:$0xff]
    %v56 = vcombine.high %v40, %v40
    %v57 = vcombine.high %v41, %v41
    %v58 = vcombine.high %v42, %v42
    %v59 = vcombine.high %v43, %v43
    %v60 = vcombine.high %v44, %v44
    %v61 = vcombine.high %v45, %v45
    %v62 = vcombine.high %v46, %v46
    %v63 = vcombine.high %v47, %v47
    %v72 = vpack.c.bf16 %v40, %v40
    %v73 = vpack.c.bf16 %v56, %v56
    %v74 = vpack.c.bf16 %v41, %v41
    %v75 = vpack.c.bf16 %v57, %v57
    %v76 = vpack.c.bf16 %v42, %v42
    %v77 = vpack.c.bf16 %v58, %v58
    %v78 = vpack.c.bf16 %v43, %v43
    %v79 = vpack.c.bf16 %v59, %v59
    %v80 = vpack.c.bf16 %v44, %v44
    %v81 = vpack.c.bf16 %v60, %v60
    %v82 = vpack.c.bf16 %v45, %v45
    %v83 = vpack.c.bf16 %v61, %v61
    %v84 = vpack.c.bf16 %v46, %v46
    %v85 = vpack.c.bf16 %v62, %v62
    %v86 = vpack.c.bf16 %v47, %v47
    %v87 = vpack.c.bf16 %v63, %v63
    %v88 = vld [vmem:[#allocation5] sm:$0xf]
    %v105 = vrot.slane %v72, 6
    %v106 = vrot.slane %v73, 6
    %v107 = vrot.slane %v74, 6
    %v108 = vrot.slane %v75, 6
    %v109 = vrot.slane %v76, 6
    %v110 = vrot.slane %v77, 6
    %v111 = vrot.slane %v78, 6
    %v112 = vrot.slane %v79, 6
    %v113 = vrot.slane %v80, 6
    %v114 = vrot.slane %v81, 6
    %v115 = vrot.slane %v82, 6
    %v116 = vrot.slane %v83, 6
    %v117 = vrot.slane %v84, 6
    %v118 = vrot.slane %v85, 6
    %v119 = vrot.slane %v86, 6
    %v120 = vrot.slane %v87, 6
    %121 = vrot.lane.b32.xlu0 %v105, 127
    %v122 = vpop.permute.xlu0 %121
    %123 = vrot.lane.b32.xlu0 %v106, 127
    %v124 = vpop.permute.xlu0 %123
    %125 = vrot.lane.b32.xlu0 %v107, 127
    %v126 = vpop.permute.xlu0 %125
    %127 = vrot.lane.b32.xlu0 %v108, 127
    %v128 = vpop.permute.xlu0 %127
    %129 = vrot.lane.b32.xlu0 %v109, 127
    %v130 = vpop.permute.xlu0 %129
    %131 = vrot.lane.b32.xlu0 %v110, 127
    %v132 = vpop.permute.xlu0 %131
    %133 = vrot.lane.b32.xlu0 %v111, 127
    %v134 = vpop.permute.xlu0 %133
    %135 = vrot.lane.b32.xlu0 %v112, 127
    %v136 = vpop.permute.xlu0 %135
    %137 = vrot.lane.b32.xlu0 %v113, 127
    %v138 = vpop.permute.xlu0 %137
    %139 = vrot.lane.b32.xlu0 %v114, 127
    %v140 = vpop.permute.xlu0 %139
    %141 = vrot.lane.b32.xlu0 %v115, 127
    %v142 = vpop.permute.xlu0 %141
    %143 = vrot.lane.b32.xlu0 %v116, 127
    %v144 = vpop.permute.xlu0 %143
    %145 = vrot.lane.b32.xlu0 %v117, 127
    %v146 = vpop.permute.xlu0 %145
    %147 = vrot.lane.b32.xlu0 %v118, 127
    %v148 = vpop.permute.xlu0 %147
    %149 = vrot.lane.b32.xlu0 %v119, 127
    %v150 = vpop.permute.xlu0 %149
    %151 = vrot.lane.b32.xlu0 %v120, 127
    %v152 = vpop.permute.xlu0 %151
    %vm153 = vcmask 1039360
    %v154 = vsel %vm153, %v122, %v124
    %v155 = vsel %vm153, %v126, %v128
    %v156 = vsel %vm153, %v130, %v132
    %v157 = vsel %vm153, %v134, %v136
    %v158 = vsel %vm153, %v138, %v140
    %v159 = vsel %vm153, %v142, %v144
    %v160 = vsel %vm153, %v146, %v148
    %v161 = vsel %vm153, %v150, %v152
    %v162 = vrot.slane %v72, 4
    %v163 = vrot.slane %v73, 4
    %v164 = vrot.slane %v74, 4
    %v165 = vrot.slane %v75, 4
    %v166 = vrot.slane %v76, 4
    %v167 = vrot.slane %v77, 4
    %v168 = vrot.slane %v78, 4
    %v169 = vrot.slane %v79, 4
    %v170 = vrot.slane %v80, 4
    %v171 = vrot.slane %v81, 4
    %v172 = vrot.slane %v82, 4
    %v173 = vrot.slane %v83, 4
    %v174 = vrot.slane %v84, 4
    %v175 = vrot.slane %v85, 4
    %v176 = vrot.slane %v86, 4
    %v177 = vrot.slane %v87, 4
    %178 = vrot.lane.b32.xlu0 %v162, 126
    %v179 = vpop.permute.xlu0 %178
    %180 = vrot.lane.b32.xlu0 %v163, 126
    %v181 = vpop.permute.xlu0 %180
    %182 = vrot.lane.b32.xlu0 %v164, 126
    %v183 = vpop.permute.xlu0 %182
    %184 = vrot.lane.b32.xlu0 %v165, 126
    %v185 = vpop.permute.xlu0 %184
    %186 = vrot.lane.b32.xlu0 %v166, 126
    %v187 = vpop.permute.xlu0 %186
    %188 = vrot.lane.b32.xlu0 %v167, 126
    %v189 = vpop.permute.xlu0 %188
    %190 = vrot.lane.b32.xlu0 %v168, 126
    %v191 = vpop.permute.xlu0 %190
    %192 = vrot.lane.b32.xlu0 %v169, 126
    %v193 = vpop.permute.xlu0 %192
    %194 = vrot.lane.b32.xlu0 %v170, 126
    %v195 = vpop.permute.xlu0 %194
    %196 = vrot.lane.b32.xlu0 %v171, 126
    %v197 = vpop.permute.xlu0 %196
    %198 = vrot.lane.b32.xlu0 %v172, 126
    %v199 = vpop.permute.xlu0 %198
    %200 = vrot.lane.b32.xlu0 %v173, 126
    %v201 = vpop.permute.xlu0 %200
    %202 = vrot.lane.b32.xlu0 %v174, 126
    %v203 = vpop.permute.xlu0 %202
    %204 = vrot.lane.b32.xlu0 %v175, 126
    %v205 = vpop.permute.xlu0 %204
    %206 = vrot.lane.b32.xlu0 %v176, 126
    %v207 = vpop.permute.xlu0 %206
    %208 = vrot.lane.b32.xlu0 %v177, 126
    %v209 = vpop.permute.xlu0 %208
    %vm210 = vcmask 1031168
    %v211 = vsel %vm210, %v179, %v181
    %v212 = vsel %vm210, %v183, %v185
    %v213 = vsel %vm210, %v187, %v189
    %v214 = vsel %vm210, %v191, %v193
    %v215 = vsel %vm210, %v195, %v197
    %v216 = vsel %vm210, %v199, %v201
    %v217 = vsel %vm210, %v203, %v205
    %v218 = vsel %vm210, %v207, %v209
    %v219 = vrot.slane %v72, 2
    %v220 = vrot.slane %v73, 2
    %v221 = vrot.slane %v74, 2
    %v222 = vrot.slane %v75, 2
    %v223 = vrot.slane %v76, 2
    %v224 = vrot.slane %v77, 2
    %v225 = vrot.slane %v78, 2
    %v226 = vrot.slane %v79, 2
    %v227 = vrot.slane %v80, 2
    %v228 = vrot.slane %v81, 2
    %v229 = vrot.slane %v82, 2
    %v230 = vrot.slane %v83, 2
    %v231 = vrot.slane %v84, 2
    %v232 = vrot.slane %v85, 2
    %v233 = vrot.slane %v86, 2
    %v234 = vrot.slane %v87, 2
    %235 = vrot.lane.b32.xlu0 %v219, 125
    %v236 = vpop.permute.xlu0 %235
    %237 = vrot.lane.b32.xlu0 %v220, 125
    %v238 = vpop.permute.xlu0 %237
    %239 = vrot.lane.b32.xlu0 %v221, 125
    %v240 = vpop.permute.xlu0 %239
    %241 = vrot.lane.b32.xlu0 %v222, 125
    %v242 = vpop.permute.xlu0 %241
    %243 = vrot.lane.b32.xlu0 %v223, 125
    %v244 = vpop.permute.xlu0 %243
    %245 = vrot.lane.b32.xlu0 %v224, 125
    %v246 = vpop.permute.xlu0 %245
    %247 = vrot.lane.b32.xlu0 %v225, 125
    %v248 = vpop.permute.xlu0 %247
    %249 = vrot.lane.b32.xlu0 %v226, 125
    %v250 = vpop.permute.xlu0 %249
    %251 = vrot.lane.b32.xlu0 %v227, 125
    %v252 = vpop.permute.xlu0 %251
    %253 = vrot.lane.b32.xlu0 %v228, 125
    %v254 = vpop.permute.xlu0 %253
    %255 = vrot.lane.b32.xlu0 %v229, 125
    %v256 = vpop.permute.xlu0 %255
    %257 = vrot.lane.b32.xlu0 %v230, 125
    %v258 = vpop.permute.xlu0 %257
    %259 = vrot.lane.b32.xlu0 %v231, 125
    %v260 = vpop.permute.xlu0 %259
    %261 = vrot.lane.b32.xlu0 %v232, 125
    %v262 = vpop.permute.xlu0 %261
    %263 = vrot.lane.b32.xlu0 %v233, 125
    %v264 = vpop.permute.xlu0 %263
    %265 = vrot.lane.b32.xlu0 %v234, 125
    %v266 = vpop.permute.xlu0 %265
    %vm267 = vcmask 1022976
    %v268 = vsel %vm267, %v236, %v238
    %v269 = vsel %vm267, %v240, %v242
    %v270 = vsel %vm267, %v244, %v246
    %v271 = vsel %vm267, %v248, %v250
    %v272 = vsel %vm267, %v252, %v254
    %v273 = vsel %vm267, %v256, %v258
    %v274 = vsel %vm267, %v260, %v262
    %v275 = vsel %vm267, %v264, %v266
    %276 = vrot.lane.b32.xlu0 %v72, 124
    %v277 = vpop.permute.xlu0 %276
    %278 = vrot.lane.b32.xlu0 %v73, 124
    %v279 = vpop.permute.xlu0 %278
    %280 = vrot.lane.b32.xlu0 %v74, 124
    %v281 = vpop.permute.xlu0 %280
    %282 = vrot.lane.b32.xlu0 %v75, 124
    %v283 = vpop.permute.xlu0 %282
    %284 = vrot.lane.b32.xlu0 %v76, 124
    %v285 = vpop.permute.xlu0 %284
    %286 = vrot.lane.b32.xlu0 %v77, 124
    %v287 = vpop.permute.xlu0 %286
    %288 = vrot.lane.b32.xlu0 %v78, 124
    %v289 = vpop.permute.xlu0 %288
    %290 = vrot.lane.b32.xlu0 %v79, 124
    %v291 = vpop.permute.xlu0 %290
    %292 = vrot.lane.b32.xlu0 %v80, 124
    %v293 = vpop.permute.xlu0 %292
    %294 = vrot.lane.b32.xlu0 %v81, 124
    %v295 = vpop.permute.xlu0 %294
    %296 = vrot.lane.b32.xlu0 %v82, 124
    %v297 = vpop.permute.xlu0 %296
    %298 = vrot.lane.b32.xlu0 %v83, 124
    %v299 = vpop.permute.xlu0 %298
    %300 = vrot.lane.b32.xlu0 %v84, 124
    %v301 = vpop.permute.xlu0 %300
    %302 = vrot.lane.b32.xlu0 %v85, 124
    %v303 = vpop.permute.xlu0 %302
    %304 = vrot.lane.b32.xlu0 %v86, 124
    %v305 = vpop.permute.xlu0 %304
    %306 = vrot.lane.b32.xlu0 %v87, 124
    %v307 = vpop.permute.xlu0 %306
    %vm308 = vcmask 1014784
    %v309 = vsel %vm308, %v277, %v279
    %v310 = vsel %vm308, %v281, %v283
    %v311 = vsel %vm308, %v285, %v287
    %v312 = vsel %vm308, %v289, %v291
    %v313 = vsel %vm308, %v293, %v295
    %v314 = vsel %vm308, %v297, %v299
    %v315 = vsel %vm308, %v301, %v303
    %v316 = vsel %vm308, %v305, %v307
    %317 = vrot.lane.b32.xlu0 %v105, 123
    %v318 = vpop.permute.xlu0 %317
    %319 = vrot.lane.b32.xlu0 %v106, 123
    %v320 = vpop.permute.xlu0 %319
    %321 = vrot.lane.b32.xlu0 %v107, 123
    %v322 = vpop.permute.xlu0 %321
    %323 = vrot.lane.b32.xlu0 %v108, 123
    %v324 = vpop.permute.xlu0 %323
    %325 = vrot.lane.b32.xlu0 %v109, 123
    %v326 = vpop.permute.xlu0 %325
    %327 = vrot.lane.b32.xlu0 %v110, 123
    %v328 = vpop.permute.xlu0 %327
    %329 = vrot.lane.b32.xlu0 %v111, 123
    %v330 = vpop.permute.xlu0 %329
    %331 = vrot.lane.b32.xlu0 %v112, 123
    %v332 = vpop.permute.xlu0 %331
    %333 = vrot.lane.b32.xlu0 %v113, 123
    %v334 = vpop.permute.xlu0 %333
    %335 = vrot.lane.b32.xlu0 %v114, 123
    %v336 = vpop.permute.xlu0 %335
    %337 = vrot.lane.b32.xlu0 %v115, 123
    %v338 = vpop.permute.xlu0 %337
    %339 = vrot.lane.b32.xlu0 %v116, 123
    %v340 = vpop.permute.xlu0 %339
    %341 = vrot.lane.b32.xlu0 %v117, 123
    %v342 = vpop.permute.xlu0 %341
    %343 = vrot.lane.b32.xlu0 %v118, 123
    %v344 = vpop.permute.xlu0 %343
    %345 = vrot.lane.b32.xlu0 %v119, 123
    %v346 = vpop.permute.xlu0 %345
    %347 = vrot.lane.b32.xlu0 %v120, 123
    %v348 = vpop.permute.xlu0 %347
    %vm349 = vcmask 1006592
    %v350 = vsel %vm349, %v318, %v320
    %v351 = vsel %vm349, %v322, %v324
    %v352 = vsel %vm349, %v326, %v328
    %v353 = vsel %vm349, %v330, %v332
    %v354 = vsel %vm349, %v334, %v336
    %v355 = vsel %vm349, %v338, %v340
    %v356 = vsel %vm349, %v342, %v344
    %v357 = vsel %vm349, %v346, %v348
    %358 = vrot.lane.b32.xlu0 %v162, 122
    %v359 = vpop.permute.xlu0 %358
    %360 = vrot.lane.b32.xlu0 %v163, 122
    %v361 = vpop.permute.xlu0 %360
    %362 = vrot.lane.b32.xlu0 %v164, 122
    %v363 = vpop.permute.xlu0 %362
    %364 = vrot.lane.b32.xlu0 %v165, 122
    %v365 = vpop.permute.xlu0 %364
    %366 = vrot.lane.b32.xlu0 %v166, 122
    %v367 = vpop.permute.xlu0 %366
    %368 = vrot.lane.b32.xlu0 %v167, 122
    %v369 = vpop.permute.xlu0 %368
    %370 = vrot.lane.b32.xlu0 %v168, 122
    %v371 = vpop.permute.xlu0 %370
    %372 = vrot.lane.b32.xlu0 %v169, 122
    %v373 = vpop.permute.xlu0 %372
    %374 = vrot.lane.b32.xlu0 %v170, 122
    %v375 = vpop.permute.xlu0 %374
    %376 = vrot.lane.b32.xlu0 %v171, 122
    %v377 = vpop.permute.xlu0 %376
    %378 = vrot.lane.b32.xlu0 %v172, 122
    %v379 = vpop.permute.xlu0 %378
    %380 = vrot.lane.b32.xlu0 %v173, 122
    %v381 = vpop.permute.xlu0 %380
    %382 = vrot.lane.b32.xlu0 %v174, 122
    %v383 = vpop.permute.xlu0 %382
    %384 = vrot.lane.b32.xlu0 %v175, 122
    %v385 = vpop.permute.xlu0 %384
    %386 = vrot.lane.b32.xlu0 %v176, 122
    %v387 = vpop.permute.xlu0 %386
    %388 = vrot.lane.b32.xlu0 %v177, 122
    %v389 = vpop.permute.xlu0 %388
    %vm390 = vcmask 998400
    %v391 = vsel %vm390, %v359, %v361
    %v392 = vsel %vm390, %v363, %v365
    %v393 = vsel %vm390, %v367, %v369
    %v394 = vsel %vm390, %v371, %v373
    %v395 = vsel %vm390, %v375, %v377
    %v396 = vsel %vm390, %v379, %v381
    %v397 = vsel %vm390, %v383, %v385
    %v398 = vsel %vm390, %v387, %v389
    %399 = vrot.lane.b32.xlu0 %v219, 121
    %v400 = vpop.permute.xlu0 %399
    %401 = vrot.lane.b32.xlu0 %v220, 121
    %v402 = vpop.permute.xlu0 %401
    %403 = vrot.lane.b32.xlu0 %v221, 121
    %v404 = vpop.permute.xlu0 %403
    %405 = vrot.lane.b32.xlu0 %v222, 121
    %v406 = vpop.permute.xlu0 %405
    %407 = vrot.lane.b32.xlu0 %v223, 121
    %v408 = vpop.permute.xlu0 %407
    %409 = vrot.lane.b32.xlu0 %v224, 121
    %v410 = vpop.permute.xlu0 %409
    %411 = vrot.lane.b32.xlu0 %v225, 121
    %v412 = vpop.permute.xlu0 %411
    %413 = vrot.lane.b32.xlu0 %v226, 121
    %v414 = vpop.permute.xlu0 %413
    %415 = vrot.lane.b32.xlu0 %v227, 121
    %v416 = vpop.permute.xlu0 %415
    %417 = vrot.lane.b32.xlu0 %v228, 121
    %v418 = vpop.permute.xlu0 %417
    %419 = vrot.lane.b32.xlu0 %v229, 121
    %v420 = vpop.permute.xlu0 %419
    %421 = vrot.lane.b32.xlu0 %v230, 121
    %v422 = vpop.permute.xlu0 %421
    %423 = vrot.lane.b32.xlu0 %v231, 121
    %v424 = vpop.permute.xlu0 %423
    %425 = vrot.lane.b32.xlu0 %v232, 121
    %v426 = vpop.permute.xlu0 %425
    %427 = vrot.lane.b32.xlu0 %v233, 121
    %v428 = vpop.permute.xlu0 %427
    %429 = vrot.lane.b32.xlu0 %v234, 121
    %v430 = vpop.permute.xlu0 %429
    %vm431 = vcmask 990208
    %v432 = vsel %vm431, %v400, %v402
    %v433 = vsel %vm431, %v404, %v406
    %v434 = vsel %vm431, %v408, %v410
    %v435 = vsel %vm431, %v412, %v414
    %v436 = vsel %vm431, %v416, %v418
    %v437 = vsel %vm431, %v420, %v422
    %v438 = vsel %vm431, %v424, %v426
    %v439 = vsel %vm431, %v428, %v430
    %440 = vrot.lane.b32.xlu0 %v72, 120
    %v441 = vpop.permute.xlu0 %440
    %442 = vrot.lane.b32.xlu0 %v73, 120
    %v443 = vpop.permute.xlu0 %442
    %444 = vrot.lane.b32.xlu0 %v74, 120
    %v445 = vpop.permute.xlu0 %444
    %446 = vrot.lane.b32.xlu0 %v75, 120
    %v447 = vpop.permute.xlu0 %446
    %448 = vrot.lane.b32.xlu0 %v76, 120
    %v449 = vpop.permute.xlu0 %448
    %450 = vrot.lane.b32.xlu0 %v77, 120
    %v451 = vpop.permute.xlu0 %450
    %452 = vrot.lane.b32.xlu0 %v78, 120
    %v453 = vpop.permute.xlu0 %452
    %454 = vrot.lane.b32.xlu0 %v79, 120
    %v455 = vpop.permute.xlu0 %454
    %456 = vrot.lane.b32.xlu0 %v80, 120
    %v457 = vpop.permute.xlu0 %456
    %458 = vrot.lane.b32.xlu0 %v81, 120
    %v459 = vpop.permute.xlu0 %458
    %460 = vrot.lane.b32.xlu0 %v82, 120
    %v461 = vpop.permute.xlu0 %460
    %462 = vrot.lane.b32.xlu0 %v83, 120
    %v463 = vpop.permute.xlu0 %462
    %464 = vrot.lane.b32.xlu0 %v84, 120
    %v465 = vpop.permute.xlu0 %464
    %466 = vrot.lane.b32.xlu0 %v85, 120
    %v467 = vpop.permute.xlu0 %466
    %468 = vrot.lane.b32.xlu0 %v86, 120
    %v469 = vpop.permute.xlu0 %468
    %470 = vrot.lane.b32.xlu0 %v87, 120
    %v471 = vpop.permute.xlu0 %470
    %vm472 = vcmask 982016
    %v473 = vsel %vm472, %v441, %v443
    %v474 = vsel %vm472, %v445, %v447
    %v475 = vsel %vm472, %v449, %v451
    %v476 = vsel %vm472, %v453, %v455
    %v477 = vsel %vm472, %v457, %v459
    %v478 = vsel %vm472, %v461, %v463
    %v479 = vsel %vm472, %v465, %v467
    %v480 = vsel %vm472, %v469, %v471
    %481 = vrot.lane.b32.xlu0 %v105, 119
    %v482 = vpop.permute.xlu0 %481
    %483 = vrot.lane.b32.xlu0 %v106, 119
    %v484 = vpop.permute.xlu0 %483
    %485 = vrot.lane.b32.xlu0 %v107, 119
    %v486 = vpop.permute.xlu0 %485
    %487 = vrot.lane.b32.xlu0 %v108, 119
    %v488 = vpop.permute.xlu0 %487
    %489 = vrot.lane.b32.xlu0 %v109, 119
    %v490 = vpop.permute.xlu0 %489
    %491 = vrot.lane.b32.xlu0 %v110, 119
    %v492 = vpop.permute.xlu0 %491
    %493 = vrot.lane.b32.xlu0 %v111, 119
    %v494 = vpop.permute.xlu0 %493
    %495 = vrot.lane.b32.xlu0 %v112, 119
    %v496 = vpop.permute.xlu0 %495
    %497 = vrot.lane.b32.xlu0 %v113, 119
    %v498 = vpop.permute.xlu0 %497
    %499 = vrot.lane.b32.xlu0 %v114, 119
    %v500 = vpop.permute.xlu0 %499
    %501 = vrot.lane.b32.xlu0 %v115, 119
    %v502 = vpop.permute.xlu0 %501
    %503 = vrot.lane.b32.xlu0 %v116, 119
    %v504 = vpop.permute.xlu0 %503
    %505 = vrot.lane.b32.xlu0 %v117, 119
    %v506 = vpop.permute.xlu0 %505
    %507 = vrot.lane.b32.xlu0 %v118, 119
    %v508 = vpop.permute.xlu0 %507
    %509 = vrot.lane.b32.xlu0 %v119, 119
    %v510 = vpop.permute.xlu0 %509
    %511 = vrot.lane.b32.xlu0 %v120, 119
    %v512 = vpop.permute.xlu0 %511
    %vm513 = vcmask 973824
    %v514 = vsel %vm513, %v482, %v484
    %v515 = vsel %vm513, %v486, %v488
    %v516 = vsel %vm513, %v490, %v492
    %v517 = vsel %vm513, %v494, %v496
    %v518 = vsel %vm513, %v498, %v500
    %v519 = vsel %vm513, %v502, %v504
    %v520 = vsel %vm513, %v506, %v508
    %v521 = vsel %vm513, %v510, %v512
    %522 = vrot.lane.b32.xlu0 %v162, 118
    %v523 = vpop.permute.xlu0 %522
    %524 = vrot.lane.b32.xlu0 %v163, 118
    %v525 = vpop.permute.xlu0 %524
    %526 = vrot.lane.b32.xlu0 %v164, 118
    %v527 = vpop.permute.xlu0 %526
    %528 = vrot.lane.b32.xlu0 %v165, 118
    %v529 = vpop.permute.xlu0 %528
    %530 = vrot.lane.b32.xlu0 %v166, 118
    %v531 = vpop.permute.xlu0 %530
    %532 = vrot.lane.b32.xlu0 %v167, 118
    %v533 = vpop.permute.xlu0 %532
    %534 = vrot.lane.b32.xlu0 %v168, 118
    %v535 = vpop.permute.xlu0 %534
    %536 = vrot.lane.b32.xlu0 %v169, 118
    %v537 = vpop.permute.xlu0 %536
    %538 = vrot.lane.b32.xlu0 %v170, 118
    %v539 = vpop.permute.xlu0 %538
    %540 = vrot.lane.b32.xlu0 %v171, 118
    %v541 = vpop.permute.xlu0 %540
    %542 = vrot.lane.b32.xlu0 %v172, 118
    %v543 = vpop.permute.xlu0 %542
    %544 = vrot.lane.b32.xlu0 %v173, 118
    %v545 = vpop.permute.xlu0 %544
    %546 = vrot.lane.b32.xlu0 %v174, 118
    %v547 = vpop.permute.xlu0 %546
    %548 = vrot.lane.b32.xlu0 %v175, 118
    %v549 = vpop.permute.xlu0 %548
    %550 = vrot.lane.b32.xlu0 %v176, 118
    %v551 = vpop.permute.xlu0 %550
    %552 = vrot.lane.b32.xlu0 %v177, 118
    %v553 = vpop.permute.xlu0 %552
    %vm554 = vcmask 965632
    %v555 = vsel %vm554, %v523, %v525
    %v556 = vsel %vm554, %v527, %v529
    %v557 = vsel %vm554, %v531, %v533
    %v558 = vsel %vm554, %v535, %v537
    %v559 = vsel %vm554, %v539, %v541
    %v560 = vsel %vm554, %v543, %v545
    %v561 = vsel %vm554, %v547, %v549
    %v562 = vsel %vm554, %v551, %v553
    %563 = vrot.lane.b32.xlu0 %v219, 117
    %v564 = vpop.permute.xlu0 %563
    %565 = vrot.lane.b32.xlu0 %v220, 117
    %v566 = vpop.permute.xlu0 %565
    %567 = vrot.lane.b32.xlu0 %v221, 117
    %v568 = vpop.permute.xlu0 %567
    %569 = vrot.lane.b32.xlu0 %v222, 117
    %v570 = vpop.permute.xlu0 %569
    %571 = vrot.lane.b32.xlu0 %v223, 117
    %v572 = vpop.permute.xlu0 %571
    %573 = vrot.lane.b32.xlu0 %v224, 117
    %v574 = vpop.permute.xlu0 %573
    %575 = vrot.lane.b32.xlu0 %v225, 117
    %v576 = vpop.permute.xlu0 %575
    %577 = vrot.lane.b32.xlu0 %v226, 117
    %v578 = vpop.permute.xlu0 %577
    %579 = vrot.lane.b32.xlu0 %v227, 117
    %v580 = vpop.permute.xlu0 %579
    %581 = vrot.lane.b32.xlu0 %v228, 117
    %v582 = vpop.permute.xlu0 %581
    %583 = vrot.lane.b32.xlu0 %v229, 117
    %v584 = vpop.permute.xlu0 %583
    %585 = vrot.lane.b32.xlu0 %v230, 117
    %v586 = vpop.permute.xlu0 %585
    %587 = vrot.lane.b32.xlu0 %v231, 117
    %v588 = vpop.permute.xlu0 %587
    %589 = vrot.lane.b32.xlu0 %v232, 117
    %v590 = vpop.permute.xlu0 %589
    %591 = vrot.lane.b32.xlu0 %v233, 117
    %v592 = vpop.permute.xlu0 %591
    %593 = vrot.lane.b32.xlu0 %v234, 117
    %v594 = vpop.permute.xlu0 %593
    %vm595 = vcmask 957440
    %v596 = vsel %vm595, %v564, %v566
    %v597 = vsel %vm595, %v568, %v570
    %v598 = vsel %vm595, %v572, %v574
    %v599 = vsel %vm595, %v576, %v578
    %v600 = vsel %vm595, %v580, %v582
    %v601 = vsel %vm595, %v584, %v586
    %v602 = vsel %vm595, %v588, %v590
    %v603 = vsel %vm595, %v592, %v594
    %604 = vrot.lane.b32.xlu0 %v72, 116
    %v605 = vpop.permute.xlu0 %604
    %606 = vrot.lane.b32.xlu0 %v73, 116
    %v607 = vpop.permute.xlu0 %606
    %608 = vrot.lane.b32.xlu0 %v74, 116
    %v609 = vpop.permute.xlu0 %608
    %610 = vrot.lane.b32.xlu0 %v75, 116
    %v611 = vpop.permute.xlu0 %610
    %612 = vrot.lane.b32.xlu0 %v76, 116
    %v613 = vpop.permute.xlu0 %612
    %614 = vrot.lane.b32.xlu0 %v77, 116
    %v615 = vpop.permute.xlu0 %614
    %616 = vrot.lane.b32.xlu0 %v78, 116
    %v617 = vpop.permute.xlu0 %616
    %618 = vrot.lane.b32.xlu0 %v79, 116
    %v619 = vpop.permute.xlu0 %618
    %620 = vrot.lane.b32.xlu0 %v80, 116
    %v621 = vpop.permute.xlu0 %620
    %622 = vrot.lane.b32.xlu0 %v81, 116
    %v623 = vpop.permute.xlu0 %622
    %624 = vrot.lane.b32.xlu0 %v82, 116
    %v625 = vpop.permute.xlu0 %624
    %626 = vrot.lane.b32.xlu0 %v83, 116
    %v627 = vpop.permute.xlu0 %626
    %628 = vrot.lane.b32.xlu0 %v84, 116
    %v629 = vpop.permute.xlu0 %628
    %630 = vrot.lane.b32.xlu0 %v85, 116
    %v631 = vpop.permute.xlu0 %630
    %632 = vrot.lane.b32.xlu0 %v86, 116
    %v633 = vpop.permute.xlu0 %632
    %634 = vrot.lane.b32.xlu0 %v87, 116
    %v635 = vpop.permute.xlu0 %634
    %vm636 = vcmask 949248
    %v637 = vsel %vm636, %v605, %v607
    %v638 = vsel %vm636, %v609, %v611
    %v639 = vsel %vm636, %v613, %v615
    %v640 = vsel %vm636, %v617, %v619
    %v641 = vsel %vm636, %v621, %v623
    %v642 = vsel %vm636, %v625, %v627
    %v643 = vsel %vm636, %v629, %v631
    %v644 = vsel %vm636, %v633, %v635
    %645 = vrot.lane.b32.xlu0 %v105, 115
    %v646 = vpop.permute.xlu0 %645
    %647 = vrot.lane.b32.xlu0 %v106, 115
    %v648 = vpop.permute.xlu0 %647
    %649 = vrot.lane.b32.xlu0 %v107, 115
    %v650 = vpop.permute.xlu0 %649
    %651 = vrot.lane.b32.xlu0 %v108, 115
    %v652 = vpop.permute.xlu0 %651
    %653 = vrot.lane.b32.xlu0 %v109, 115
    %v654 = vpop.permute.xlu0 %653
    %655 = vrot.lane.b32.xlu0 %v110, 115
    %v656 = vpop.permute.xlu0 %655
    %657 = vrot.lane.b32.xlu0 %v111, 115
    %v658 = vpop.permute.xlu0 %657
    %659 = vrot.lane.b32.xlu0 %v112, 115
    %v660 = vpop.permute.xlu0 %659
    %661 = vrot.lane.b32.xlu0 %v113, 115
    %v662 = vpop.permute.xlu0 %661
    %663 = vrot.lane.b32.xlu0 %v114, 115
    %v664 = vpop.permute.xlu0 %663
    %665 = vrot.lane.b32.xlu0 %v115, 115
    %v666 = vpop.permute.xlu0 %665
    %667 = vrot.lane.b32.xlu0 %v116, 115
    %v668 = vpop.permute.xlu0 %667
    %669 = vrot.lane.b32.xlu0 %v117, 115
    %v670 = vpop.permute.xlu0 %669
    %671 = vrot.lane.b32.xlu0 %v118, 115
    %v672 = vpop.permute.xlu0 %671
    %673 = vrot.lane.b32.xlu0 %v119, 115
    %v674 = vpop.permute.xlu0 %673
    %675 = vrot.lane.b32.xlu0 %v120, 115
    %v676 = vpop.permute.xlu0 %675
    %vm677 = vcmask 941056
    %v678 = vsel %vm677, %v646, %v648
    %v679 = vsel %vm677, %v650, %v652
    %v680 = vsel %vm677, %v654, %v656
    %v681 = vsel %vm677, %v658, %v660
    %v682 = vsel %vm677, %v662, %v664
    %v683 = vsel %vm677, %v666, %v668
    %v684 = vsel %vm677, %v670, %v672
    %v685 = vsel %vm677, %v674, %v676
    %686 = vrot.lane.b32.xlu0 %v162, 114
    %v687 = vpop.permute.xlu0 %686
    %688 = vrot.lane.b32.xlu0 %v163, 114
    %v689 = vpop.permute.xlu0 %688
    %690 = vrot.lane.b32.xlu0 %v164, 114
    %v691 = vpop.permute.xlu0 %690
    %692 = vrot.lane.b32.xlu0 %v165, 114
    %v693 = vpop.permute.xlu0 %692
    %694 = vrot.lane.b32.xlu0 %v166, 114
    %v695 = vpop.permute.xlu0 %694
    %696 = vrot.lane.b32.xlu0 %v167, 114
    %v697 = vpop.permute.xlu0 %696
    %698 = vrot.lane.b32.xlu0 %v168, 114
    %v699 = vpop.permute.xlu0 %698
    %700 = vrot.lane.b32.xlu0 %v169, 114
    %v701 = vpop.permute.xlu0 %700
    %702 = vrot.lane.b32.xlu0 %v170, 114
    %v703 = vpop.permute.xlu0 %702
    %704 = vrot.lane.b32.xlu0 %v171, 114
    %v705 = vpop.permute.xlu0 %704
    %706 = vrot.lane.b32.xlu0 %v172, 114
    %v707 = vpop.permute.xlu0 %706
    %708 = vrot.lane.b32.xlu0 %v173, 114
    %v709 = vpop.permute.xlu0 %708
    %710 = vrot.lane.b32.xlu0 %v174, 114
    %v711 = vpop.permute.xlu0 %710
    %712 = vrot.lane.b32.xlu0 %v175, 114
    %v713 = vpop.permute.xlu0 %712
    %714 = vrot.lane.b32.xlu0 %v176, 114
    %v715 = vpop.permute.xlu0 %714
    %716 = vrot.lane.b32.xlu0 %v177, 114
    %v717 = vpop.permute.xlu0 %716
    %vm718 = vcmask 932864
    %v719 = vsel %vm718, %v687, %v689
    %v720 = vsel %vm718, %v691, %v693
    %v721 = vsel %vm718, %v695, %v697
    %v722 = vsel %vm718, %v699, %v701
    %v723 = vsel %vm718, %v703, %v705
    %v724 = vsel %vm718, %v707, %v709
    %v725 = vsel %vm718, %v711, %v713
    %v726 = vsel %vm718, %v715, %v717
    %727 = vrot.lane.b32.xlu0 %v219, 113
    %v728 = vpop.permute.xlu0 %727
    %729 = vrot.lane.b32.xlu0 %v220, 113
    %v730 = vpop.permute.xlu0 %729
    %731 = vrot.lane.b32.xlu0 %v221, 113
    %v732 = vpop.permute.xlu0 %731
    %733 = vrot.lane.b32.xlu0 %v222, 113
    %v734 = vpop.permute.xlu0 %733
    %735 = vrot.lane.b32.xlu0 %v223, 113
    %v736 = vpop.permute.xlu0 %735
    %737 = vrot.lane.b32.xlu0 %v224, 113
    %v738 = vpop.permute.xlu0 %737
    %739 = vrot.lane.b32.xlu0 %v225, 113
    %v740 = vpop.permute.xlu0 %739
    %741 = vrot.lane.b32.xlu0 %v226, 113
    %v742 = vpop.permute.xlu0 %741
    %743 = vrot.lane.b32.xlu0 %v227, 113
    %v744 = vpop.permute.xlu0 %743
    %745 = vrot.lane.b32.xlu0 %v228, 113
    %v746 = vpop.permute.xlu0 %745
    %747 = vrot.lane.b32.xlu0 %v229, 113
    %v748 = vpop.permute.xlu0 %747
    %749 = vrot.lane.b32.xlu0 %v230, 113
    %v750 = vpop.permute.xlu0 %749
    %751 = vrot.lane.b32.xlu0 %v231, 113
    %v752 = vpop.permute.xlu0 %751
    %753 = vrot.lane.b32.xlu0 %v232, 113
    %v754 = vpop.permute.xlu0 %753
    %755 = vrot.lane.b32.xlu0 %v233, 113
    %v756 = vpop.permute.xlu0 %755
    %757 = vrot.lane.b32.xlu0 %v234, 113
    %v758 = vpop.permute.xlu0 %757
    %vm759 = vcmask 924672
    %v760 = vsel %vm759, %v728, %v730
    %v761 = vsel %vm759, %v732, %v734
    %v762 = vsel %vm759, %v736, %v738
    %v763 = vsel %vm759, %v740, %v742
    %v764 = vsel %vm759, %v744, %v746
    %v765 = vsel %vm759, %v748, %v750
    %v766 = vsel %vm759, %v752, %v754
    %v767 = vsel %vm759, %v756, %v758
    %vm768 = vcmask 1041408
    %v771 = vsel %vm768, %v72, %v154
    %v774 = vsel %vm768, %v74, %v155
    %v777 = vsel %vm768, %v76, %v156
    %v780 = vsel %vm768, %v78, %v157
    %v783 = vsel %vm768, %v80, %v158
    %v786 = vsel %vm768, %v82, %v159
    %v789 = vsel %vm768, %v84, %v160
    %v792 = vsel %vm768, %v86, %v161
    %vm793 = vcmask 1043456
    %v795 = vsel %vm793, %v771, %v211
    %v797 = vsel %vm793, %v774, %v212
    %v799 = vsel %vm793, %v777, %v213
    %v801 = vsel %vm793, %v780, %v214
    %v803 = vsel %vm793, %v783, %v215
    %v805 = vsel %vm793, %v786, %v216
    %v807 = vsel %vm793, %v789, %v217
    %v809 = vsel %vm793, %v792, %v218
    %vm810 = vcmask 1045504
    %v812 = vsel %vm810, %v795, %v268
    %v815 = vsel %vm810, %v797, %v269
    %v818 = vsel %vm810, %v799, %v270
    %v821 = vsel %vm810, %v801, %v271
    %v824 = vsel %vm810, %v803, %v272
    %v827 = vsel %vm810, %v805, %v273
    %v830 = vsel %vm810, %v807, %v274
    %v833 = vsel %vm810, %v809, %v275
    %v837 = vsel %vm768, %v309, %v350
    %v840 = vsel %vm768, %v310, %v351
    %v843 = vsel %vm768, %v311, %v352
    %v846 = vsel %vm768, %v312, %v353
    %v849 = vsel %vm768, %v313, %v354
    %v852 = vsel %vm768, %v314, %v355
    %v855 = vsel %vm768, %v315, %v356
    %v858 = vsel %vm768, %v316, %v357
    %v860 = vsel %vm793, %v837, %v391
    %v862 = vsel %vm793, %v840, %v392
    %v864 = vsel %vm793, %v843, %v393
    %v866 = vsel %vm793, %v846, %v394
    %v868 = vsel %vm793, %v849, %v395
    %v870 = vsel %vm793, %v852, %v396
    %v872 = vsel %vm793, %v855, %v397
    %v874 = vsel %vm793, %v858, %v398
    %v876 = vsel %vm810, %v860, %v432
    %v879 = vsel %vm810, %v862, %v433
    %v882 = vsel %vm810, %v864, %v434
    %v885 = vsel %vm810, %v866, %v435
    %v888 = vsel %vm810, %v868, %v436
    %v891 = vsel %vm810, %v870, %v437
    %v894 = vsel %vm810, %v872, %v438
    %v897 = vsel %vm810, %v874, %v439
    %v901 = vsel %vm768, %v473, %v514
    %v904 = vsel %vm768, %v474, %v515
    %v907 = vsel %vm768, %v475, %v516
    %v910 = vsel %vm768, %v476, %v517
    %v913 = vsel %vm768, %v477, %v518
    %v916 = vsel %vm768, %v478, %v519
    %v919 = vsel %vm768, %v479, %v520
    %v922 = vsel %vm768, %v480, %v521
    %v924 = vsel %vm793, %v901, %v555
    %v926 = vsel %vm793, %v904, %v556
    %v928 = vsel %vm793, %v907, %v557
    %v930 = vsel %vm793, %v910, %v558
    %v932 = vsel %vm793, %v913, %v559
    %v934 = vsel %vm793, %v916, %v560
    %v936 = vsel %vm793, %v919, %v561
    %v938 = vsel %vm793, %v922, %v562
    %v940 = vsel %vm810, %v924, %v596
    %v943 = vsel %vm810, %v926, %v597
    %v946 = vsel %vm810, %v928, %v598
    %v949 = vsel %vm810, %v930, %v599
    %v952 = vsel %vm810, %v932, %v600
    %v955 = vsel %vm810, %v934, %v601
    %v958 = vsel %vm810, %v936, %v602
    %v961 = vsel %vm810, %v938, %v603
    %v965 = vsel %vm768, %v637, %v678
    %v968 = vsel %vm768, %v638, %v679
    %v971 = vsel %vm768, %v639, %v680
    %v974 = vsel %vm768, %v640, %v681
    %v977 = vsel %vm768, %v641, %v682
    %v980 = vsel %vm768, %v642, %v683
    %v983 = vsel %vm768, %v643, %v684
    %v986 = vsel %vm768, %v644, %v685
    %v988 = vsel %vm793, %v965, %v719
    %v990 = vsel %vm793, %v968, %v720
    %v992 = vsel %vm793, %v971, %v721
    %v994 = vsel %vm793, %v974, %v722
    %v996 = vsel %vm793, %v977, %v723
    %v998 = vsel %vm793, %v980, %v724
    %v1000 = vsel %vm793, %v983, %v725
    %v1002 = vsel %vm793, %v986, %v726
    %v1004 = vsel %vm810, %v988, %v760
    %v1007 = vsel %vm810, %v990, %v761
    %v1010 = vsel %vm810, %v992, %v762
    %v1013 = vsel %vm810, %v994, %v763
    %v1016 = vsel %vm810, %v996, %v764
    %v1019 = vsel %vm810, %v998, %v765
    %v1022 = vsel %vm810, %v1000, %v766
    %v1025 = vsel %vm810, %v1002, %v767
    %v1029 = vsel %vm768, %v73, %v124
    %v1032 = vsel %vm768, %v75, %v128
    %v1035 = vsel %vm768, %v77, %v132
    %v1038 = vsel %vm768, %v79, %v136
    %v1041 = vsel %vm768, %v81, %v140
    %v1044 = vsel %vm768, %v83, %v144
    %v1047 = vsel %vm768, %v85, %v148
    %v1050 = vsel %vm768, %v87, %v152
    %v1052 = vsel %vm793, %v1029, %v181
    %v1054 = vsel %vm793, %v1032, %v185
    %v1056 = vsel %vm793, %v1035, %v189
    %v1058 = vsel %vm793, %v1038, %v193
    %v1060 = vsel %vm793, %v1041, %v197
    %v1062 = vsel %vm793, %v1044, %v201
    %v1064 = vsel %vm793, %v1047, %v205
    %v1066 = vsel %vm793, %v1050, %v209
    %v1068 = vsel %vm810, %v1052, %v238
    %v1070 = vsel %vm810, %v1054, %v242
    %v1072 = vsel %vm810, %v1056, %v246
    %v1074 = vsel %vm810, %v1058, %v250
    %v1076 = vsel %vm810, %v1060, %v254
    %v1078 = vsel %vm810, %v1062, %v258
    %v1080 = vsel %vm810, %v1064, %v262
    %v1082 = vsel %vm810, %v1066, %v266
    %v1085 = vsel %vm768, %v279, %v320
    %v1088 = vsel %vm768, %v283, %v324
    %v1091 = vsel %vm768, %v287, %v328
    %v1094 = vsel %vm768, %v291, %v332
    %v1097 = vsel %vm768, %v295, %v336
    %v1100 = vsel %vm768, %v299, %v340
    %v1103 = vsel %vm768, %v303, %v344
    %v1106 = vsel %vm768, %v307, %v348
    %v1108 = vsel %vm793, %v1085, %v361
    %v1110 = vsel %vm793, %v1088, %v365
    %v1112 = vsel %vm793, %v1091, %v369
    %v1114 = vsel %vm793, %v1094, %v373
    %v1116 = vsel %vm793, %v1097, %v377
    %v1118 = vsel %vm793, %v1100, %v381
    %v1120 = vsel %vm793, %v1103, %v385
    %v1122 = vsel %vm793, %v1106, %v389
    %v1124 = vsel %vm810, %v1108, %v402
    %v1126 = vsel %vm810, %v1110, %v406
    %v1128 = vsel %vm810, %v1112, %v410
    %v1130 = vsel %vm810, %v1114, %v414
    %v1132 = vsel %vm810, %v1116, %v418
    %v1134 = vsel %vm810, %v1118, %v422
    %v1136 = vsel %vm810, %v1120, %v426
    %v1138 = vsel %vm810, %v1122, %v430
    %v1141 = vsel %vm768, %v443, %v484
    %v1144 = vsel %vm768, %v447, %v488
    %v1147 = vsel %vm768, %v451, %v492
    %v1150 = vsel %vm768, %v455, %v496
    %v1153 = vsel %vm768, %v459, %v500
    %v1156 = vsel %vm768, %v463, %v504
    %v1159 = vsel %vm768, %v467, %v508
    %v1162 = vsel %vm768, %v471, %v512
    %v1164 = vsel %vm793, %v1141, %v525
    %v1166 = vsel %vm793, %v1144, %v529
    %v1168 = vsel %vm793, %v1147, %v533
    %v1170 = vsel %vm793, %v1150, %v537
    %v1172 = vsel %vm793, %v1153, %v541
    %v1174 = vsel %vm793, %v1156, %v545
    %v1176 = vsel %vm793, %v1159, %v549
    %v1178 = vsel %vm793, %v1162, %v553
    %v1180 = vsel %vm810, %v1164, %v566
    %v1182 = vsel %vm810, %v1166, %v570
    %v1184 = vsel %vm810, %v1168, %v574
    %v1186 = vsel %vm810, %v1170, %v578
    %v1188 = vsel %vm810, %v1172, %v582
    %v1190 = vsel %vm810, %v1174, %v586
    %v1192 = vsel %vm810, %v1176, %v590
    %v1194 = vsel %vm810, %v1178, %v594
    %v1197 = vsel %vm768, %v607, %v648
    %v1200 = vsel %vm768, %v611, %v652
    %v1203 = vsel %vm768, %v615, %v656
    %v1206 = vsel %vm768, %v619, %v660
    %v1209 = vsel %vm768, %v623, %v664
    %v1212 = vsel %vm768, %v627, %v668
    %v1215 = vsel %vm768, %v631, %v672
    %v1218 = vsel %vm768, %v635, %v676
    %v1220 = vsel %vm793, %v965, 1065369472
    %v1222 = vsel %vm793, %v1197, 1065369472
    %v1224 = vsel %vm793, %v968, 1065369472
    %v1226 = vsel %vm793, %v1200, 1065369472
    %v1228 = vsel %vm793, %v971, 1065369472
    %v1230 = vsel %vm793, %v1203, 1065369472
    %v1232 = vsel %vm793, %v974, 1065369472
    %v1234 = vsel %vm793, %v1206, 1065369472
    %v1236 = vsel %vm793, %v977, 1065369472
    %v1238 = vsel %vm793, %v1209, 1065369472
    %v1240 = vsel %vm793, %v980, 1065369472
    %v1242 = vsel %vm793, %v1212, 1065369472
    %v1244 = vsel %vm793, %v983, 1065369472
    %v1246 = vsel %vm793, %v1215, 1065369472
    %v1248 = vsel %vm793, %v986, 1065369472
    %v1250 = vsel %vm793, %v1218, 1065369472
    %vm1252 = vcmask 1044480
    %vm1253 = vsmask.f32 4352
    %vm1254 = vmand %vm1252, %vm1253
    %v1255 = vsel %vm1254, %v1220, 0
    %v1256 = vsel %vm1254, %v1222, 0
    %v1257 = vsel %vm1254, %v1224, 0
    %v1258 = vsel %vm1254, %v1226, 0
    %v1259 = vsel %vm1254, %v1228, 0
    %v1260 = vsel %vm1254, %v1230, 0
    %v1261 = vsel %vm1254, %v1232, 0
    %v1262 = vsel %vm1254, %v1234, 0
    %v1263 = vsel %vm1254, %v1236, 0
    %v1264 = vsel %vm1254, %v1238, 0
    %v1265 = vsel %vm1254, %v1240, 0
    %v1266 = vsel %vm1254, %v1242, 0
    %v1267 = vsel %vm1254, %v1244, 0
    %v1268 = vsel %vm1254, %v1246, 0
    %v1269 = vsel %vm1254, %v1248, 0
    %v1270 = vsel %vm1254, %v1250, 0
    %1335 = vrot.lane.b32.xlu0 %v812, 112
    %v1336 = vpop.permute.xlu0 %1335
    %1337 = vrot.lane.b32.xlu0 %v1068, 112
    %v1338 = vpop.permute.xlu0 %1337
    %1339 = vrot.lane.b32.xlu0 %v876, 112
    %v1340 = vpop.permute.xlu0 %1339
    %1341 = vrot.lane.b32.xlu0 %v1124, 112
    %v1342 = vpop.permute.xlu0 %1341
    %1343 = vrot.lane.b32.xlu0 %v940, 112
    %v1344 = vpop.permute.xlu0 %1343
    %1345 = vrot.lane.b32.xlu0 %v1180, 112
    %v1346 = vpop.permute.xlu0 %1345
    %1347 = vrot.lane.b32.xlu0 %v1255, 112
    %v1348 = vpop.permute.xlu0 %1347
    %1349 = vrot.lane.b32.xlu0 %v1256, 112
    %v1350 = vpop.permute.xlu0 %1349
    %1351 = vrot.lane.b32.xlu0 %v815, 112
    %v1352 = vpop.permute.xlu0 %1351
    %1353 = vrot.lane.b32.xlu0 %v1070, 112
    %v1354 = vpop.permute.xlu0 %1353
    %1355 = vrot.lane.b32.xlu0 %v879, 112
    %v1356 = vpop.permute.xlu0 %1355
    %1357 = vrot.lane.b32.xlu0 %v1126, 112
    %v1358 = vpop.permute.xlu0 %1357
    %1359 = vrot.lane.b32.xlu0 %v943, 112
    %v1360 = vpop.permute.xlu0 %1359
    %1361 = vrot.lane.b32.xlu0 %v1182, 112
    %v1362 = vpop.permute.xlu0 %1361
    %1363 = vrot.lane.b32.xlu0 %v1257, 112
    %v1364 = vpop.permute.xlu0 %1363
    %1365 = vrot.lane.b32.xlu0 %v1258, 112
    %v1366 = vpop.permute.xlu0 %1365
    %1367 = vrot.lane.b32.xlu0 %v818, 112
    %v1368 = vpop.permute.xlu0 %1367
    %1369 = vrot.lane.b32.xlu0 %v1072, 112
    %v1370 = vpop.permute.xlu0 %1369
    %1371 = vrot.lane.b32.xlu0 %v882, 112
    %v1372 = vpop.permute.xlu0 %1371
    %1373 = vrot.lane.b32.xlu0 %v1128, 112
    %v1374 = vpop.permute.xlu0 %1373
    %1375 = vrot.lane.b32.xlu0 %v946, 112
    %v1376 = vpop.permute.xlu0 %1375
    %1377 = vrot.lane.b32.xlu0 %v1184, 112
    %v1378 = vpop.permute.xlu0 %1377
    %1379 = vrot.lane.b32.xlu0 %v1259, 112
    %v1380 = vpop.permute.xlu0 %1379
    %1381 = vrot.lane.b32.xlu0 %v1260, 112
    %v1382 = vpop.permute.xlu0 %1381
    %1383 = vrot.lane.b32.xlu0 %v821, 112
    %v1384 = vpop.permute.xlu0 %1383
    %1385 = vrot.lane.b32.xlu0 %v1074, 112
    %v1386 = vpop.permute.xlu0 %1385
    %1387 = vrot.lane.b32.xlu0 %v885, 112
    %v1388 = vpop.permute.xlu0 %1387
    %1389 = vrot.lane.b32.xlu0 %v1130, 112
    %v1390 = vpop.permute.xlu0 %1389
    %1391 = vrot.lane.b32.xlu0 %v949, 112
    %v1392 = vpop.permute.xlu0 %1391
    %1393 = vrot.lane.b32.xlu0 %v1186, 112
    %v1394 = vpop.permute.xlu0 %1393
    %1395 = vrot.lane.b32.xlu0 %v1261, 112
    %v1396 = vpop.permute.xlu0 %1395
    %1397 = vrot.lane.b32.xlu0 %v1262, 112
    %v1398 = vpop.permute.xlu0 %1397
    %1399 = vrot.lane.b32.xlu0 %v824, 112
    %v1400 = vpop.permute.xlu0 %1399
    %1401 = vrot.lane.b32.xlu0 %v1076, 112
    %v1402 = vpop.permute.xlu0 %1401
    %1403 = vrot.lane.b32.xlu0 %v888, 112
    %v1404 = vpop.permute.xlu0 %1403
    %1405 = vrot.lane.b32.xlu0 %v1132, 112
    %v1406 = vpop.permute.xlu0 %1405
    %1407 = vrot.lane.b32.xlu0 %v952, 112
    %v1408 = vpop.permute.xlu0 %1407
    %1409 = vrot.lane.b32.xlu0 %v1188, 112
    %v1410 = vpop.permute.xlu0 %1409
    %1411 = vrot.lane.b32.xlu0 %v1263, 112
    %v1412 = vpop.permute.xlu0 %1411
    %1413 = vrot.lane.b32.xlu0 %v1264, 112
    %v1414 = vpop.permute.xlu0 %1413
    %1415 = vrot.lane.b32.xlu0 %v827, 112
    %v1416 = vpop.permute.xlu0 %1415
    %1417 = vrot.lane.b32.xlu0 %v1078, 112
    %v1418 = vpop.permute.xlu0 %1417
    %1419 = vrot.lane.b32.xlu0 %v891, 112
    %v1420 = vpop.permute.xlu0 %1419
    %1421 = vrot.lane.b32.xlu0 %v1134, 112
    %v1422 = vpop.permute.xlu0 %1421
    %1423 = vrot.lane.b32.xlu0 %v955, 112
    %v1424 = vpop.permute.xlu0 %1423
    %1425 = vrot.lane.b32.xlu0 %v1190, 112
    %v1426 = vpop.permute.xlu0 %1425
    %1427 = vrot.lane.b32.xlu0 %v1265, 112
    %v1428 = vpop.permute.xlu0 %1427
    %1429 = vrot.lane.b32.xlu0 %v1266, 112
    %v1430 = vpop.permute.xlu0 %1429
    %1431 = vrot.lane.b32.xlu0 %v830, 112
    %v1432 = vpop.permute.xlu0 %1431
    %1433 = vrot.lane.b32.xlu0 %v1080, 112
    %v1434 = vpop.permute.xlu0 %1433
    %1435 = vrot.lane.b32.xlu0 %v894, 112
    %v1436 = vpop.permute.xlu0 %1435
    %1437 = vrot.lane.b32.xlu0 %v1136, 112
    %v1438 = vpop.permute.xlu0 %1437
    %1439 = vrot.lane.b32.xlu0 %v958, 112
    %v1440 = vpop.permute.xlu0 %1439
    %1441 = vrot.lane.b32.xlu0 %v1192, 112
    %v1442 = vpop.permute.xlu0 %1441
    %1443 = vrot.lane.b32.xlu0 %v1267, 112
    %v1444 = vpop.permute.xlu0 %1443
    %1445 = vrot.lane.b32.xlu0 %v1268, 112
    %v1446 = vpop.permute.xlu0 %1445
    %1447 = vrot.lane.b32.xlu0 %v833, 112
    %v1448 = vpop.permute.xlu0 %1447
    %1449 = vrot.lane.b32.xlu0 %v1082, 112
    %v1450 = vpop.permute.xlu0 %1449
    %1451 = vrot.lane.b32.xlu0 %v897, 112
    %v1452 = vpop.permute.xlu0 %1451
    %1453 = vrot.lane.b32.xlu0 %v1138, 112
    %v1454 = vpop.permute.xlu0 %1453
    %1455 = vrot.lane.b32.xlu0 %v961, 112
    %v1456 = vpop.permute.xlu0 %1455
    %1457 = vrot.lane.b32.xlu0 %v1194, 112
    %v1458 = vpop.permute.xlu0 %1457
    %1459 = vrot.lane.b32.xlu0 %v1269, 112
    %v1460 = vpop.permute.xlu0 %1459
    %1461 = vrot.lane.b32.xlu0 %v1270, 112
    %v1462 = vpop.permute.xlu0 %1461
    %vm1463 = vcmask 916480
    %v1464 = vsel %vm1463, %v1336, %v1338
    %v1465 = vsel %vm1463, %v1340, %v1342
    %v1466 = vsel %vm1463, %v1344, %v1346
    %v1467 = vsel %vm1463, %v1348, %v1350
    %v1468 = vsel %vm1463, %v1352, %v1354
    %v1469 = vsel %vm1463, %v1356, %v1358
    %v1470 = vsel %vm1463, %v1360, %v1362
    %v1471 = vsel %vm1463, %v1364, %v1366
    %v1472 = vsel %vm1463, %v1368, %v1370
    %v1473 = vsel %vm1463, %v1372, %v1374
    %v1474 = vsel %vm1463, %v1376, %v1378
    %v1475 = vsel %vm1463, %v1380, %v1382
    %v1476 = vsel %vm1463, %v1384, %v1386
    %v1477 = vsel %vm1463, %v1388, %v1390
    %v1478 = vsel %vm1463, %v1392, %v1394
    %v1479 = vsel %vm1463, %v1396, %v1398
    %v1480 = vsel %vm1463, %v1400, %v1402
    %v1481 = vsel %vm1463, %v1404, %v1406
    %v1482 = vsel %vm1463, %v1408, %v1410
    %v1483 = vsel %vm1463, %v1412, %v1414
    %v1484 = vsel %vm1463, %v1416, %v1418
    %v1485 = vsel %vm1463, %v1420, %v1422
    %v1486 = vsel %vm1463, %v1424, %v1426
    %v1487 = vsel %vm1463, %v1428, %v1430
    %v1488 = vsel %vm1463, %v1432, %v1434
    %v1489 = vsel %vm1463, %v1436, %v1438
    %v1490 = vsel %vm1463, %v1440, %v1442
    %v1491 = vsel %vm1463, %v1444, %v1446
    %v1492 = vsel %vm1463, %v1448, %v1450
    %v1493 = vsel %vm1463, %v1452, %v1454
    %v1494 = vsel %vm1463, %v1456, %v1458
    %v1495 = vsel %vm1463, %v1460, %v1462
    %1528 = vmatprep.subr.bf16.mxu0 0
    %1529 = vmatpush1.bf16.msra.mxu0 %v1467
    %1530 = vmatprep.subr.bf16.mxu0 0
    %1531 = vmatpush1.bf16.msra.mxu0 %v1466
    %1532 = vmatprep.subr.bf16.mxu0 0
    %1533 = vmatpush1.bf16.msra.mxu0 %v1465
    %1534 = vmatprep.subr.bf16.mxu0 0
    %1535 = vmatpush1.bf16.msra.mxu0 %v1464
    %1536 = vmatprep.subr.bf16.mxu0 0
    %1537 = vmatpush1.bf16.msra.mxu0 %v1004
    %1538 = vmatprep.subr.bf16.mxu0 0
    %1539 = vmatpush1.bf16.msra.mxu0 %v940
    %1540 = vmatprep.subr.bf16.mxu0 0
    %1541 = vmatpush1.bf16.msra.mxu0 %v876
    %1542 = vmatprep.subr.bf16.mxu0 0
    %1543 = vmatpush1.bf16.msra.mxu0 %v812
    %1544 = vmatprep.subr.bf16.mxu0 0
    %1545 = vmatpush2.bf16.msra.mxu0 0
    %1546 = vmatprep.subr.bf16.mxu0 0
    %1547 = vmatpush2.bf16.msra.mxu0 0
    %1548 = vmatprep.subr.bf16.mxu0 0
    %1549 = vmatpush2.bf16.msra.mxu0 0
    %1550 = vmatprep.subr.bf16.mxu0 0
    %1551 = vmatpush2.bf16.msra.mxu0 0
    %1552 = vmatprep.subr.bf16.mxu0 0
    %1553 = vmatpush2.bf16.msra.mxu0 0
    %1554 = vmatprep.subr.bf16.mxu0 0
    %1555 = vmatpush2.bf16.msra.mxu0 0
    %1556 = vmatprep.subr.bf16.mxu0 0
    %1557 = vmatpush2.bf16.msra.mxu0 0
    %1558 = vmatprep.subr.bf16.mxu0 0
    %1559 = vmatpush2.bf16.msra.mxu0 0
    %1560 = vmatprep.mubr.bf16.mxu0 0
    %1561 = vmatmul.mubr.bf16.gmra.mxu0 %v88
    %v1562 = vpop.f32.mrf.mxu0
    %v1563 = vadd.f32 0.0, %v1562
    %v1564 = vpop.f32.mrf.mxu0
    %v1565 = vpop.f32.mrf.mxu0
    %v1566 = vpop.f32.mrf.mxu0
    %1567 = vdwg.mxu0
    %1568 = vst [vmem:[#allocation7] sm:$0xff] %v1563
    %1569 = vmatprep.subr.bf16.mxu0 0
    %1570 = vmatpush1.bf16.msra.mxu0 %v1471
    %1571 = vmatprep.subr.bf16.mxu0 0
    %1572 = vmatpush1.bf16.msra.mxu0 %v1470
    %1573 = vmatprep.subr.bf16.mxu0 0
    %1574 = vmatpush1.bf16.msra.mxu0 %v1469
    %1575 = vmatprep.subr.bf16.mxu0 0
    %1576 = vmatpush1.bf16.msra.mxu0 %v1468
    %1577 = vmatprep.subr.bf16.mxu0 0
    %1578 = vmatpush1.bf16.msra.mxu0 %v1007
    %1579 = vmatprep.subr.bf16.mxu0 0
    %1580 = vmatpush1.bf16.msra.mxu0 %v943
    %1581 = vmatprep.subr.bf16.mxu0 0
    %1582 = vmatpush1.bf16.msra.mxu0 %v879
    %1583 = vmatprep.subr.bf16.mxu0 0
    %1584 = vmatpush1.bf16.msra.mxu0 %v815
    %1585 = vmatprep.subr.bf16.mxu0 0
    %1586 = vmatpush2.bf16.msra.mxu0 0
    %1587 = vmatprep.subr.bf16.mxu0 0
    %1588 = vmatpush2.bf16.msra.mxu0 0
    %1589 = vmatprep.subr.bf16.mxu0 0
    %1590 = vmatpush2.bf16.msra.mxu0 0
    %1591 = vmatprep.subr.bf16.mxu0 0
    %1592 = vmatpush2.bf16.msra.mxu0 0
    %1593 = vmatprep.subr.bf16.mxu0 0
    %1594 = vmatpush2.bf16.msra.mxu0 0
    %1595 = vmatprep.subr.bf16.mxu0 0
    %1596 = vmatpush2.bf16.msra.mxu0 0
    %1597 = vmatprep.subr.bf16.mxu0 0
    %1598 = vmatpush2.bf16.msra.mxu0 0
    %1599 = vmatprep.subr.bf16.mxu0 0
    %1600 = vmatpush2.bf16.msra.mxu0 0
    %1601 = vmatprep.mubr.bf16.mxu0 0
    %1602 = vmatmul.mubr.bf16.gmra.mxu0 %v88
    %v1603 = vpop.f32.mrf.mxu0
    %v1604 = vadd.f32 0.0, %v1603
    %v1605 = vpop.f32.mrf.mxu0
    %v1606 = vpop.f32.mrf.mxu0
    %v1607 = vpop.f32.mrf.mxu0
    %1608 = vdwg.mxu0
    %s1609 = scalar_lea.vmem [#allocation7], 8
    %1610 = vst [vmem:[%s1609] sm:$0xff] %v1604
    %1611 = vmatprep.subr.bf16.mxu0 0
    %1612 = vmatpush1.bf16.msra.mxu0 %v1475
    %1613 = vmatprep.subr.bf16.mxu0 0
    %1614 = vmatpush1.bf16.msra.mxu0 %v1474
    %1615 = vmatprep.subr.bf16.mxu0 0
    %1616 = vmatpush1.bf16.msra.mxu0 %v1473
    %1617 = vmatprep.subr.bf16.mxu0 0
    %1618 = vmatpush1.bf16.msra.mxu0 %v1472
    %1619 = vmatprep.subr.bf16.mxu0 0
    %1620 = vmatpush1.bf16.msra.mxu0 %v1010
    %1621 = vmatprep.subr.bf16.mxu0 0
    %1622 = vmatpush1.bf16.msra.mxu0 %v946
    %1623 = vmatprep.subr.bf16.mxu0 0
    %1624 = vmatpush1.bf16.msra.mxu0 %v882
    %1625 = vmatprep.subr.bf16.mxu0 0
    %1626 = vmatpush1.bf16.msra.mxu0 %v818
    %1627 = vmatprep.subr.bf16.mxu0 0
    %1628 = vmatpush2.bf16.msra.mxu0 0
    %1629 = vmatprep.subr.bf16.mxu0 0
    %1630 = vmatpush2.bf16.msra.mxu0 0
    %1631 = vmatprep.subr.bf16.mxu0 0
    %1632 = vmatpush2.bf16.msra.mxu0 0
    %1633 = vmatprep.subr.bf16.mxu0 0
    %1634 = vmatpush2.bf16.msra.mxu0 0
    %1635 = vmatprep.subr.bf16.mxu0 0
    %1636 = vmatpush2.bf16.msra.mxu0 0
    %1637 = vmatprep.subr.bf16.mxu0 0
    %1638 = vmatpush2.bf16.msra.mxu0 0
    %1639 = vmatprep.subr.bf16.mxu0 0
    %1640 = vmatpush2.bf16.msra.mxu0 0
    %1641 = vmatprep.subr.bf16.mxu0 0
    %1642 = vmatpush2.bf16.msra.mxu0 0
    %1643 = vmatprep.mubr.bf16.mxu0 0
    %1644 = vmatmul.mubr.bf16.gmra.mxu0 %v88
    %v1645 = vpop.f32.mrf.mxu0
    %v1646 = vadd.f32 0.0, %v1645
    %v1647 = vpop.f32.mrf.mxu0
    %v1648 = vpop.f32.mrf.mxu0
    %v1649 = vpop.f32.mrf.mxu0
    %1650 = vdwg.mxu0
    %s1651 = scalar_lea.vmem [#allocation7], 16
    %1652 = vst [vmem:[%s1651] sm:$0xff] %v1646
    %1653 = vmatprep.subr.bf16.mxu0 0
    %1654 = vmatpush1.bf16.msra.mxu0 %v1479
    %1655 = vmatprep.subr.bf16.mxu0 0
    %1656 = vmatpush1.bf16.msra.mxu0 %v1478
    %1657 = vmatprep.subr.bf16.mxu0 0
    %1658 = vmatpush1.bf16.msra.mxu0 %v1477
    %1659 = vmatprep.subr.bf16.mxu0 0
    %1660 = vmatpush1.bf16.msra.mxu0 %v1476
    %1661 = vmatprep.subr.bf16.mxu0 0
    %1662 = vmatpush1.bf16.msra.mxu0 %v1013
    %1663 = vmatprep.subr.bf16.mxu0 0
    %1664 = vmatpush1.bf16.msra.mxu0 %v949
    %1665 = vmatprep.subr.bf16.mxu0 0
    %1666 = vmatpush1.bf16.msra.mxu0 %v885
    %1667 = vmatprep.subr.bf16.mxu0 0
    %1668 = vmatpush1.bf16.msra.mxu0 %v821
    %1669 = vmatprep.subr.bf16.mxu0 0
    %1670 = vmatpush2.bf16.msra.mxu0 0
    %1671 = vmatprep.subr.bf16.mxu0 0
    %1672 = vmatpush2.bf16.msra.mxu0 0
    %1673 = vmatprep.subr.bf16.mxu0 0
    %1674 = vmatpush2.bf16.msra.mxu0 0
    %1675 = vmatprep.subr.bf16.mxu0 0
    %1676 = vmatpush2.bf16.msra.mxu0 0
    %1677 = vmatprep.subr.bf16.mxu0 0
    %1678 = vmatpush2.bf16.msra.mxu0 0
    %1679 = vmatprep.subr.bf16.mxu0 0
    %1680 = vmatpush2.bf16.msra.mxu0 0
    %1681 = vmatprep.subr.bf16.mxu0 0
    %1682 = vmatpush2.bf16.msra.mxu0 0
    %1683 = vmatprep.subr.bf16.mxu0 0
    %1684 = vmatpush2.bf16.msra.mxu0 0
    %1685 = vmatprep.mubr.bf16.mxu0 0
    %1686 = vmatmul.mubr.bf16.gmra.mxu0 %v88
    %v1687 = vpop.f32.mrf.mxu0
    %v1688 = vadd.f32 0.0, %v1687
    %v1689 = vpop.f32.mrf.mxu0
    %v1690 = vpop.f32.mrf.mxu0
    %v1691 = vpop.f32.mrf.mxu0
    %1692 = vdwg.mxu0
    %s1693 = scalar_lea.vmem [#allocation7], 24
    %1694 = vst [vmem:[%s1693] sm:$0xff] %v1688
    %1695 = vmatprep.subr.bf16.mxu0 0
    %1696 = vmatpush1.bf16.msra.mxu0 %v1483
    %1697 = vmatprep.subr.bf16.mxu0 0
    %1698 = vmatpush1.bf16.msra.mxu0 %v1482
    %1699 = vmatprep.subr.bf16.mxu0 0
    %1700 = vmatpush1.bf16.msra.mxu0 %v1481
    %1701 = vmatprep.subr.bf16.mxu0 0
    %1702 = vmatpush1.bf16.msra.mxu0 %v1480
    %1703 = vmatprep.subr.bf16.mxu0 0
    %1704 = vmatpush1.bf16.msra.mxu0 %v1016
    %1705 = vmatprep.subr.bf16.mxu0 0
    %1706 = vmatpush1.bf16.msra.mxu0 %v952
    %1707 = vmatprep.subr.bf16.mxu0 0
    %1708 = vmatpush1.bf16.msra.mxu0 %v888
    %1709 = vmatprep.subr.bf16.mxu0 0
    %1710 = vmatpush1.bf16.msra.mxu0 %v824
    %1711 = vmatprep.subr.bf16.mxu0 0
    %1712 = vmatpush2.bf16.msra.mxu0 0
    %1713 = vmatprep.subr.bf16.mxu0 0
    %1714 = vmatpush2.bf16.msra.mxu0 0
    %1715 = vmatprep.subr.bf16.mxu0 0
    %1716 = vmatpush2.bf16.msra.mxu0 0
    %1717 = vmatprep.subr.bf16.mxu0 0
    %1718 = vmatpush2.bf16.msra.mxu0 0
    %1719 = vmatprep.subr.bf16.mxu0 0
    %1720 = vmatpush2.bf16.msra.mxu0 0
    %1721 = vmatprep.subr.bf16.mxu0 0
    %1722 = vmatpush2.bf16.msra.mxu0 0
    %1723 = vmatprep.subr.bf16.mxu0 0
    %1724 = vmatpush2.bf16.msra.mxu0 0
    %1725 = vmatprep.subr.bf16.mxu0 0
    %1726 = vmatpush2.bf16.msra.mxu0 0
    %1727 = vmatprep.mubr.bf16.mxu0 0
    %1728 = vmatmul.mubr.bf16.gmra.mxu0 %v88
    %v1729 = vpop.f32.mrf.mxu0
    %v1730 = vadd.f32 0.0, %v1729
    %v1731 = vpop.f32.mrf.mxu0
    %v1732 = vpop.f32.mrf.mxu0
    %v1733 = vpop.f32.mrf.mxu0
    %1734 = vdwg.mxu0
    %s1735 = scalar_lea.vmem [#allocation7], 32
    %1736 = vst [vmem:[%s1735] sm:$0xff] %v1730
    %1737 = vmatprep.subr.bf16.mxu0 0
    %1738 = vmatpush1.bf16.msra.mxu0 %v1487
    %1739 = vmatprep.subr.bf16.mxu0 0
    %1740 = vmatpush1.bf16.msra.mxu0 %v1486
    %1741 = vmatprep.subr.bf16.mxu0 0
    %1742 = vmatpush1.bf16.msra.mxu0 %v1485
    %1743 = vmatprep.subr.bf16.mxu0 0
    %1744 = vmatpush1.bf16.msra.mxu0 %v1484
    %1745 = vmatprep.subr.bf16.mxu0 0
    %1746 = vmatpush1.bf16.msra.mxu0 %v1019
    %1747 = vmatprep.subr.bf16.mxu0 0
    %1748 = vmatpush1.bf16.msra.mxu0 %v955
    %1749 = vmatprep.subr.bf16.mxu0 0
    %1750 = vmatpush1.bf16.msra.mxu0 %v891
    %1751 = vmatprep.subr.bf16.mxu0 0
    %1752 = vmatpush1.bf16.msra.mxu0 %v827
    %1753 = vmatprep.subr.bf16.mxu0 0
    %1754 = vmatpush2.bf16.msra.mxu0 0
    %1755 = vmatprep.subr.bf16.mxu0 0
    %1756 = vmatpush2.bf16.msra.mxu0 0
    %1757 = vmatprep.subr.bf16.mxu0 0
    %1758 = vmatpush2.bf16.msra.mxu0 0
    %1759 = vmatprep.subr.bf16.mxu0 0
    %1760 = vmatpush2.bf16.msra.mxu0 0
    %1761 = vmatprep.subr.bf16.mxu0 0
    %1762 = vmatpush2.bf16.msra.mxu0 0
    %1763 = vmatprep.subr.bf16.mxu0 0
    %1764 = vmatpush2.bf16.msra.mxu0 0
    %1765 = vmatprep.subr.bf16.mxu0 0
    %1766 = vmatpush2.bf16.msra.mxu0 0
    %1767 = vmatprep.subr.bf16.mxu0 0
    %1768 = vmatpush2.bf16.msra.mxu0 0
    %1769 = vmatprep.mubr.bf16.mxu0 0
    %1770 = vmatmul.mubr.bf16.gmra.mxu0 %v88
    %v1771 = vpop.f32.mrf.mxu0
    %v1772 = vadd.f32 0.0, %v1771
    %v1773 = vpop.f32.mrf.mxu0
    %v1774 = vpop.f32.mrf.mxu0
    %v1775 = vpop.f32.mrf.mxu0
    %1776 = vdwg.mxu0
    %s1777 = scalar_lea.vmem [#allocation7], 40
    %1778 = vst [vmem:[%s1777] sm:$0xff] %v1772
    %1779 = vmatprep.subr.bf16.mxu0 0
    %1780 = vmatpush1.bf16.msra.mxu0 %v1491
    %1781 = vmatprep.subr.bf16.mxu0 0
    %1782 = vmatpush1.bf16.msra.mxu0 %v1490
    %1783 = vmatprep.subr.bf16.mxu0 0
    %1784 = vmatpush1.bf16.msra.mxu0 %v1489
    %1785 = vmatprep.subr.bf16.mxu0 0
    %1786 = vmatpush1.bf16.msra.mxu0 %v1488
    %1787 = vmatprep.subr.bf16.mxu0 0
    %1788 = vmatpush1.bf16.msra.mxu0 %v1022
    %1789 = vmatprep.subr.bf16.mxu0 0
    %1790 = vmatpush1.bf16.msra.mxu0 %v958
    %1791 = vmatprep.subr.bf16.mxu0 0
    %1792 = vmatpush1.bf16.msra.mxu0 %v894
    %1793 = vmatprep.subr.bf16.mxu0 0
    %1794 = vmatpush1.bf16.msra.mxu0 %v830
    %1795 = vmatprep.subr.bf16.mxu0 0
    %1796 = vmatpush2.bf16.msra.mxu0 0
    %1797 = vmatprep.subr.bf16.mxu0 0
    %1798 = vmatpush2.bf16.msra.mxu0 0
    %1799 = vmatprep.subr.bf16.mxu0 0
    %1800 = vmatpush2.bf16.msra.mxu0 0
    %1801 = vmatprep.subr.bf16.mxu0 0
    %1802 = vmatpush2.bf16.msra.mxu0 0
    %1803 = vmatprep.subr.bf16.mxu0 0
    %1804 = vmatpush2.bf16.msra.mxu0 0
    %1805 = vmatprep.subr.bf16.mxu0 0
    %1806 = vmatpush2.bf16.msra.mxu0 0
    %1807 = vmatprep.subr.bf16.mxu0 0
    %1808 = vmatpush2.bf16.msra.mxu0 0
    %1809 = vmatprep.subr.bf16.mxu0 0
    %1810 = vmatpush2.bf16.msra.mxu0 0
    %1811 = vmatprep.mubr.bf16.mxu0 0
    %1812 = vmatmul.mubr.bf16.gmra.mxu0 %v88
    %v1813 = vpop.f32.mrf.mxu0
    %v1814 = vadd.f32 0.0, %v1813
    %v1815 = vpop.f32.mrf.mxu0
    %v1816 = vpop.f32.mrf.mxu0
    %v1817 = vpop.f32.mrf.mxu0
    %1818 = vdwg.mxu0
    %s1819 = scalar_lea.vmem [#allocation7], 48
    %1820 = vst [vmem:[%s1819] sm:$0xff] %v1814
    %1821 = vmatprep.subr.bf16.mxu0 0
    %1822 = vmatpush1.bf16.msra.mxu0 %v1495
    %1823 = vmatprep.subr.bf16.mxu0 0
    %1824 = vmatpush1.bf16.msra.mxu0 %v1494
    %1825 = vmatprep.subr.bf16.mxu0 0
    %1826 = vmatpush1.bf16.msra.mxu0 %v1493
    %1827 = vmatprep.subr.bf16.mxu0 0
    %1828 = vmatpush1.bf16.msra.mxu0 %v1492
    %1829 = vmatprep.subr.bf16.mxu0 0
    %1830 = vmatpush1.bf16.msra.mxu0 %v1025
    %1831 = vmatprep.subr.bf16.mxu0 0
    %1832 = vmatpush1.bf16.msra.mxu0 %v961
    %1833 = vmatprep.subr.bf16.mxu0 0
    %1834 = vmatpush1.bf16.msra.mxu0 %v897
    %1835 = vmatprep.subr.bf16.mxu0 0
    %1836 = vmatpush1.bf16.msra.mxu0 %v833
    %1837 = vmatprep.subr.bf16.mxu0 0
    %1838 = vmatpush2.bf16.msra.mxu0 0
    %1839 = vmatprep.subr.bf16.mxu0 0
    %1840 = vmatpush2.bf16.msra.mxu0 0
    %1841 = vmatprep.subr.bf16.mxu0 0
    %1842 = vmatpush2.bf16.msra.mxu0 0
    %1843 = vmatprep.subr.bf16.mxu0 0
    %1844 = vmatpush2.bf16.msra.mxu0 0
    %1845 = vmatprep.subr.bf16.mxu0 0
    %1846 = vmatpush2.bf16.msra.mxu0 0
    %1847 = vmatprep.subr.bf16.mxu0 0
    %1848 = vmatpush2.bf16.msra.mxu0 0
    %1849 = vmatprep.subr.bf16.mxu0 0
    %1850 = vmatpush2.bf16.msra.mxu0 0
    %1851 = vmatprep.subr.bf16.mxu0 0
    %1852 = vmatpush2.bf16.msra.mxu0 0
    %1853 = vmatprep.mubr.bf16.mxu0 0
    %1854 = vmatmul.mubr.bf16.gmra.mxu0 %v88
    %v1855 = vpop.f32.mrf.mxu0
    %v1856 = vadd.f32 0.0, %v1855
    %v1857 = vpop.f32.mrf.mxu0
    %v1858 = vpop.f32.mrf.mxu0
    %v1859 = vpop.f32.mrf.mxu0
    %1860 = vdwg.mxu0
    %s1861 = scalar_lea.vmem [#allocation7], 56
    %1862 = vst [vmem:[%s1861] sm:$0xff] %v1856
    // Predicated region
    $region18: #{tpu_custom_call.1} parent=1 // pred_check
      _
    $region19: #{tpu_custom_call.1} parent=1 // pred_check_branch
      %1864 = sbr.rel (0) target = $region21
    $region20: #{tpu_custom_call.1} parent=1 // pred_region
      %s1866 = ssub.s32 1024, 1024
      %1867 = vsyncadd [#allocation4], %s1866
      %s1868 = sshll.u32 [#allocation7], 4
      %s1869 = int_to_ptr.vmem [resolvable:$true] %s1868
      %1874 = dma.vmem_to_hbm [thread:$0]  %s1869, 1024, %s2, [#allocation4], 128, 128, 8
    $region21: #{tpu_custom_call.1} parent=1 // pred_fallthru
      _
    // Predicated region
    $region22: #{tpu_custom_call.1} parent=1 // pred_check
      _
    $region23: #{tpu_custom_call.1} parent=1 // pred_check_branch
      %1876 = sbr.rel (0) target = $region25
    $region24: #{tpu_custom_call.1} parent=1 // pred_region
      %1877 = dma.done [#allocation4], 1024
    $region25: #{tpu_custom_call.1} parent=1 // pred_fallthru
      _
    %1878 = vsyncpa [#allocation3], 1
    %1879 = vsyncpa [#allocation6], 1
    %1880 = vsyncpa [#allocation4], 1

</llo_original>
